<compile_context>
chip_gen: v7x
topology: tpu7x:2x2x1
jax: 0.10.0
libtpu: 0.0.40
codegen_flags: <defaults>
</compile_context>

<pallas_src>
import functools

import jax
import jax.numpy as jnp
from jax.experimental import pallas as pl
from jax.experimental.pallas import tpu as pltpu


def _gelu_tanh(x):
    # TODO(synk): PyTorch nn.GELU() default is the exact erf form; the tanh
    #             approximation is used here (and in the reference) since erf has no
    #             guaranteed Mosaic lowering.  Max abs deviation ~3e-4.
    c = 0.7978845608028654  # sqrt(2/pi)
    return 0.5 * x * (1.0 + jnp.tanh(c * (x + 0.044715 * x * x * x)))


def _layernorm(t, g, b, eps):
    mu = jnp.mean(t, axis=-1, keepdims=True)
    tc = t - mu
    var = jnp.mean(tc * tc, axis=-1, keepdims=True)
    return tc * jax.lax.rsqrt(var + eps) * g + b


def _encoder_kernel(x_ref, pos_ref, mask_ref, ones_ref,
                    ln1g_ref, ln1b_ref, wq_ref, wk_ref, wv_ref, wout_ref,
                    bout_ref, ln2g_ref, ln2b_ref, w1_ref, b1_ref, w2_ref,
                    b2_ref, o_ref, acc_ref, *, heads, eps, v_pos):
    Bb, N, D = x_ref.shape
    H = heads
    R = Bb * N
    HN = H * N
    l = pl.program_id(1)

    # First layer for this batch block: load the activation into the resident f32
    # scratch; it stays in VMEM for the whole depth loop (no per-layer HBM traffic).
    @pl.when(l == 0)
    def _():
        acc_ref[...] = x_ref[...].astype(jnp.float32)

    x3 = acc_ref[...]                                  # (Bb, N, D) pre-pos activation
    xq3 = x3 + pos_ref[...]                            # pos (zero-padded over keypoints)
    x2 = x3.reshape(R, D)                              # v input rows (v_pos=False)
    xq2 = xq3.reshape(R, D)                            # q/k input rows & residual

    # ---- attention block: LN1 -> Q/K/V projections -> head-packed attention ----
    nq = _layernorm(xq2, ln1g_ref[...], ln1b_ref[...], eps)
    nv = nq if v_pos else _layernorm(x2, ln1g_ref[...], ln1b_ref[...], eps)

    nq_bf = nq.astype(jnp.bfloat16)
    q = jnp.dot(nq_bf, wq_ref[...], preferred_element_type=jnp.float32)  # scale pre-folded
    k = jnp.dot(nq_bf, wk_ref[...], preferred_element_type=jnp.float32)
    v = jnp.dot(nv.astype(jnp.bfloat16), wv_ref[...],
                preferred_element_type=jnp.float32)

    q3 = q.reshape(Bb, N, D).astype(jnp.bfloat16)
    k3 = k.reshape(Bb, N, D)
    v3 = v.reshape(Bb, N, D)

    # Pack heads into the lane axis: tile K/V along sublanes to (H*N, D) and zero out
    # the features that do not belong to the row's head (constant mask).  Scores are
    # then one lane-dense (N, H*N=128) tile per batch element and the context matmul
    # against the block-structured V re-merges the heads (columns already h*dh + d).
    k_bd = (jnp.tile(k3, (1, H, 1)) * mask_ref[...]).astype(jnp.bfloat16)  # (Bb, HN, D)
    v_bd = (jnp.tile(v3, (1, H, 1)) * mask_ref[...]).astype(jnp.bfloat16)  # (Bb, HN, D)

    scores = jnp.einsum('bnd,bmd->bnm', q3, k_bd,
                        preferred_element_type=jnp.float32).reshape(R, HN)
    # Row max over all heads: softmax is shift-invariant per segment, so this is exact
    # while staying a single plain lane reduction.
    m = jnp.max(scores, axis=-1, keepdims=True)
    e = jnp.exp(scores - m)
    # Per-head (16-lane segment) sums via an exact f32 MXU matmul with a
    # block-diagonal ones matrix; result is broadcast back onto every lane.
    denom = jnp.dot(e, ones_ref[...], preferred_element_type=jnp.float32)
    attn = (e * pl.reciprocal(denom, approx=True)).astype(jnp.bfloat16)
    ctx = jnp.einsum('bnm,bmd->bnd', attn.reshape(Bb, N, HN), v_bd,
                     preferred_element_type=jnp.float32)                 # (Bb, N, D)
    ctx2 = ctx.reshape(R, D)

    attn_out = jnp.dot(ctx2.astype(jnp.bfloat16), wout_ref[...],
                       preferred_element_type=jnp.float32) + bout_ref[...]
    x1 = attn_out + xq2                                # Residual adds q (= x + pos)

    # ---- feed-forward block: LN2 -> Linear -> GELU -> Linear (+ residual) ----
    n2 = _layernorm(x1, ln2g_ref[...], ln2b_ref[...], eps)
    h1 = jnp.dot(n2.astype(jnp.bfloat16), w1_ref[...],
                 preferred_element_type=jnp.float32) + b1_ref[...]
    h1 = _gelu_tanh(h1)
    h2 = jnp.dot(h1.astype(jnp.bfloat16), w2_ref[...],
                 preferred_element_type=jnp.float32) + b2_ref[...]
    y3 = (h2 + x1).reshape(Bb, N, D)

    acc_ref[...] = y3                                  # running activation stays in VMEM

    @pl.when(l == pl.num_programs(1) - 1)
    def _():
        o_ref[...] = y3.astype(o_ref.dtype)


def _choose_block_batch(B, N):
    # Aim for ~512 rows (R = Bb*N) per grid step to amortize per-step overhead and fill
    # the MXU, but keep >= 2 steps on the batch axis (v7x two-TC megacore) and Bb | B.
    target_rows = 512
    bb = max(1, min(B, max(1, target_rows // max(N, 1))))
    if B >= 2:
        bb = min(bb, max(1, B // 2))
    bb = max(1, bb)
    while B % bb:
        bb -= 1
    return bb


def prepare_encoder_params(layers, pos, num_tokens, *, heads, num_keypoints,
                           scale_with_head=False):
    """One-time parameter prep (do once per model, not per forward): stack per-layer
    weights along a leading L axis, fold the softmax scale into W_q, cast MXU operands
    to bf16, and build the constant head-packing masks."""
    L = len(layers)
    D = layers[0]['wq'].shape[0]
    M = layers[0]['w1'].shape[1]
    N = num_tokens
    H = heads
    assert D % H == 0
    dh = D // H
    scale = dh ** (-0.5) if scale_with_head else D ** (-0.5)

    def stacked(key, shape, dtype):
        return jnp.stack([jnp.asarray(p[key], jnp.float32).reshape(shape)
                          for p in layers], axis=0).astype(dtype)

    params = dict(
        ln1g=stacked('ln1_g', (1, D), jnp.float32),
        ln1b=stacked('ln1_b', (1, D), jnp.float32),
        wq=jnp.stack([jnp.asarray(p['wq'], jnp.float32) * scale
                      for p in layers], axis=0).astype(jnp.bfloat16),
        wk=stacked('wk', (D, D), jnp.bfloat16),
        wv=stacked('wv', (D, D), jnp.bfloat16),
        wout=stacked('wout', (D, D), jnp.bfloat16),
        bout=stacked('bout', (1, D), jnp.float32),
        ln2g=stacked('ln2_g', (1, D), jnp.float32),
        ln2b=stacked('ln2_b', (1, D), jnp.float32),
        w1=stacked('w1', (D, M), jnp.bfloat16),
        b1=stacked('b1', (1, M), jnp.float32),
        w2=stacked('w2', (M, D), jnp.bfloat16),
        b2=stacked('b2', (1, D), jnp.float32),
    )
    pos_pad = jnp.zeros((1, N, D), jnp.float32)
    pos_pad = pos_pad.at[0, num_keypoints:].set(jnp.asarray(pos, jnp.float32))
    # Head-packing constants: mask_hd[h*N + j, d] = 1 iff feature d belongs to head h;
    # ones_bd[h*N + j, h'*N + j'] = 1 iff h == h' (per-head softmax segment sums).
    feat_head = jnp.arange(D) // dh
    lane_head = jnp.arange(H * N) // N
    mask_hd = (lane_head[:, None] == feat_head[None, :]).astype(jnp.float32)   # (HN, D)
    ones_bd = (lane_head[:, None] == lane_head[None, :]).astype(jnp.float32)   # (HN, HN)
    params.update(pos_pad=pos_pad, mask_hd=mask_hd, ones_bd=ones_bd)
    return params


def transformer_encoder_pallas(x, params, *, v_pos=False, block_batch=None, eps=1e-5):
    """x: (B, N, D); params: output of prepare_encoder_params.  Weights are
    pre-transposed so y = x @ W (all DEPTH layers run in one pallas_call)."""
    B, N, D = x.shape
    L, _, M = params['w1'].shape
    HN = params['mask_hd'].shape[0]
    H = HN // N
    assert HN == H * N and D % H == 0

    Bb = _choose_block_batch(B, N) if block_batch is None else block_batch
    assert B % Bb == 0

    kernel = functools.partial(_encoder_kernel, heads=H, eps=eps, v_pos=v_pos)
    c2 = lambda b, l: (0, 0)
    c3 = lambda b, l: (0, 0, 0)
    wmap = lambda b, l: (l, 0, 0)
    xmap = lambda b, l: (b, 0, 0)

    return pl.pallas_call(
        kernel,
        out_shape=jax.ShapeDtypeStruct((B, N, D), x.dtype),
        grid=(B // Bb, L),
        in_specs=[
            pl.BlockSpec((Bb, N, D), xmap),            # x (block of batch rows)
            pl.BlockSpec((1, N, D), c3),               # padded positional encoding
            pl.BlockSpec((HN, D), c2),                 # head-packing mask (K & V expand)
            pl.BlockSpec((HN, HN), c2),                # block-diagonal ones (softmax sums)
            pl.BlockSpec((None, 1, D), wmap),          # LN1 gamma      (layer l)
            pl.BlockSpec((None, 1, D), wmap),          # LN1 beta
            pl.BlockSpec((None, D, D), wmap),          # W_q (bf16, scale folded)
            pl.BlockSpec((None, D, D), wmap),          # W_k (bf16)
            pl.BlockSpec((None, D, D), wmap),          # W_v (bf16)
            pl.BlockSpec((None, D, D), wmap),          # W_out (bf16)
            pl.BlockSpec((None, 1, D), wmap),          # b_out
            pl.BlockSpec((None, 1, D), wmap),          # LN2 gamma
            pl.BlockSpec((None, 1, D), wmap),          # LN2 beta
            pl.BlockSpec((None, D, M), wmap),          # W_1 (bf16)
            pl.BlockSpec((None, 1, M), wmap),          # b_1
            pl.BlockSpec((None, M, D), wmap),          # W_2 (bf16)
            pl.BlockSpec((None, 1, D), wmap),          # b_2
        ],
        out_specs=pl.BlockSpec((Bb, N, D), xmap),
        scratch_shapes=[pltpu.VMEM((Bb, N, D), jnp.float32)],   # resident activation
        compiler_params=pltpu.CompilerParams(
            dimension_semantics=("parallel", "arbitrary"),
            vmem_limit_bytes=32 * 1024 * 1024),
    )(x, params['pos_pad'], params['mask_hd'], params['ones_bd'],
      params['ln1g'], params['ln1b'], params['wq'], params['wk'], params['wv'],
      params['wout'], params['bout'], params['ln2g'], params['ln2b'],
      params['w1'], params['b1'], params['w2'], params['b2'])


def transformer_encoder_reference(x, pos, layers, *, heads, num_keypoints,
                                  scale_with_head=False, v_pos=False, eps=1e-5):
    """Pure-JAX f32 reference mirroring the PyTorch forward (all_attn=True, mask=None)."""
    B, N, D = x.shape
    dh = D // heads
    scale = dh ** (-0.5) if scale_with_head else D ** (-0.5)
    pos_pad = jnp.zeros((N, D), jnp.float32).at[num_keypoints:].set(pos)

    def ln(t, g, b):
        mu = t.mean(-1, keepdims=True)
        var = ((t - mu) ** 2).mean(-1, keepdims=True)
        return (t - mu) / jnp.sqrt(var + eps) * g + b

    for p in layers:
        xq = x + pos_pad[None]
        v_in = xq if v_pos else x
        nq = ln(xq, p['ln1_g'], p['ln1_b'])
        nv = ln(v_in, p['ln1_g'], p['ln1_b'])
        q = nq @ p['wq']
        k = nq @ p['wk']
        v = nv @ p['wv']

        def split(t):
            return t.reshape(B, N, heads, dh).transpose(0, 2, 1, 3)

        qh, kh, vh = split(q), split(k), split(v)
        dots = jnp.einsum('bhid,bhjd->bhij', qh, kh) * scale
        attn = jax.nn.softmax(dots, axis=-1)
        out = jnp.einsum('bhij,bhjd->bhid', attn, vh)
        out = out.transpose(0, 2, 1, 3).reshape(B, N, D)
        out = out @ p['wout'] + p['bout']
        x = out + xq                                  # Residual adds q (= x + pos)
        n2 = ln(x, p['ln2_g'], p['ln2_b'])
        h = _gelu_tanh(n2 @ p['w1'] + p['b1'])
        x = h @ p['w2'] + p['b2'] + x
    return x


if __name__ == "__main__":
    # Small config consistent with the module:
    # dim=64, depth=2, heads=8, mlp_dim=128, num_keypoints=4, batch=2,
    # tokens=16 (4 keypoint tokens + 12 patch tokens).
    B, N, D, H, M, NK, DEPTH = 2, 16, 64, 8, 128, 4, 2

    key = jax.random.PRNGKey(0)
    kx, kpos, kp = jax.random.split(key, 3)
    x = jax.random.normal(kx, (B, N, D), dtype=jnp.float32)
    pos = 0.5 * jax.random.normal(kpos, (N - NK, D), dtype=jnp.float32)

    def linear_init(k, fan_in, shape):
        lim = 1.0 / (fan_in ** 0.5)
        return jax.random.uniform(k, shape, jnp.float32, -lim, lim)

    layers = []
    for li in range(DEPTH):
        ks = jax.random.split(jax.random.fold_in(kp, li), 13)
        layers.append(dict(
            ln1_g=1.0 + 0.1 * jax.random.normal(ks[0], (D,), jnp.float32),
            ln1_b=0.1 * jax.random.normal(ks[1], (D,), jnp.float32),
            wq=linear_init(ks[2], D, (D, D)),
            wk=linear_init(ks[3], D, (D, D)),
            wv=linear_init(ks[4], D, (D, D)),
            wout=linear_init(ks[5], D, (D, D)),
            bout=linear_init(ks[6], D, (D,)),
            ln2_g=1.0 + 0.1 * jax.random.normal(ks[7], (D,), jnp.float32),
            ln2_b=0.1 * jax.random.normal(ks[8], (D,), jnp.float32),
            w1=linear_init(ks[9], D, (D, M)),
            b1=linear_init(ks[10], D, (M,)),
            w2=linear_init(ks[11], M, (M, D)),
            b2=linear_init(ks[12], M, (D,)),
        ))

    # TODO(synk): the optional boolean `mask` argument and the all_attn=False path
    #             (which leaves q/k/v undefined in the reference forward) are not wired in.
    # One-time parameter prep (stacking, scale fold, bf16 casts, head-packing masks).
    params = prepare_encoder_params(layers, pos, N, heads=H, num_keypoints=NK)

    fwd = jax.jit(transformer_encoder_pallas)
    y = jax.block_until_ready(fwd(x, params))

    y_ref = transformer_encoder_reference(x, pos, layers, heads=H, num_keypoints=NK)
    assert y.shape == (B, N, D)
    # Tolerance loosened for bf16 MXU operands + approx reciprocal in the kernel.
    max_err = float(jnp.max(jnp.abs(y - y_ref)))
    assert jnp.allclose(y, y_ref, atol=5e-2, rtol=5e-2), f"mismatch vs reference: {max_err}"
    print("KERNEL_OK")
</pallas_src>

<mosaic_0001>
module attributes {stable_mosaic.version = 11 : i64} {
  func.func @_encoder_kernel(%arg0: i32, %arg1: i32, %arg2: memref<1x16x64xf32, #tpu.memory_space<vmem>>, %arg3: memref<1x16x64xf32, #tpu.memory_space<vmem>>, %arg4: memref<128x64xf32, #tpu.memory_space<vmem>>, %arg5: memref<128x128xf32, #tpu.memory_space<vmem>>, %arg6: memref<1x1x64xf32, #tpu.memory_space<vmem>>, %arg7: memref<1x1x64xf32, #tpu.memory_space<vmem>>, %arg8: memref<1x64x64xbf16, #tpu.memory_space<vmem>>, %arg9: memref<1x64x64xbf16, #tpu.memory_space<vmem>>, %arg10: memref<1x64x64xbf16, #tpu.memory_space<vmem>>, %arg11: memref<1x64x64xbf16, #tpu.memory_space<vmem>>, %arg12: memref<1x1x64xf32, #tpu.memory_space<vmem>>, %arg13: memref<1x1x64xf32, #tpu.memory_space<vmem>>, %arg14: memref<1x1x64xf32, #tpu.memory_space<vmem>>, %arg15: memref<1x64x128xbf16, #tpu.memory_space<vmem>>, %arg16: memref<1x1x128xf32, #tpu.memory_space<vmem>>, %arg17: memref<1x128x64xbf16, #tpu.memory_space<vmem>>, %arg18: memref<1x1x64xf32, #tpu.memory_space<vmem>>, %arg19: memref<1x16x64xf32, #tpu.memory_space<vmem>>, %arg20: memref<1x16x64xf32, #tpu.memory_space<vmem>>) attributes {dimension_semantics = [#tpu.dimension_semantics<parallel>, #tpu.dimension_semantics<arbitrary>], iteration_bounds = array<i64: 2, 2>, scalar_prefetch = 0 : i64, scratch_operands = 1 : i64, tpu.core_type = #tpu.core_type<tc>, window_params = [{transform_indices = @transform_0, window_bounds = array<i64: 1, 16, 64>}, {pipeline_mode = #tpu.pipeline_mode<synchronous>, transform_indices = @transform_1, window_bounds = array<i64: 1, 16, 64>}, {pipeline_mode = #tpu.pipeline_mode<synchronous>, transform_indices = @transform_2, window_bounds = array<i64: 128, 64>}, {pipeline_mode = #tpu.pipeline_mode<synchronous>, transform_indices = @transform_3, window_bounds = array<i64: 128, 128>}, {transform_indices = @transform_4, window_bounds = array<i64: 1, 1, 64>}, {transform_indices = @transform_5, window_bounds = array<i64: 1, 1, 64>}, {transform_indices = @transform_6, window_bounds = array<i64: 1, 64, 64>}, {transform_indices = @transform_7, window_bounds = array<i64: 1, 64, 64>}, {transform_indices = @transform_8, window_bounds = array<i64: 1, 64, 64>}, {transform_indices = @transform_9, window_bounds = array<i64: 1, 64, 64>}, {transform_indices = @transform_10, window_bounds = array<i64: 1, 1, 64>}, {transform_indices = @transform_11, window_bounds = array<i64: 1, 1, 64>}, {transform_indices = @transform_12, window_bounds = array<i64: 1, 1, 64>}, {transform_indices = @transform_13, window_bounds = array<i64: 1, 64, 128>}, {transform_indices = @transform_14, window_bounds = array<i64: 1, 1, 128>}, {transform_indices = @transform_15, window_bounds = array<i64: 1, 128, 64>}, {transform_indices = @transform_16, window_bounds = array<i64: 1, 1, 64>}, {transform_indices = @transform_17, window_bounds = array<i64: 1, 16, 64>}]} {
    %c0_i32 = arith.constant 0 : i32
    %0 = arith.cmpi eq, %arg1, %c0_i32 : i32
    %1 = arith.extui %0 : i1 to i32
    %c0_i32_0 = arith.constant 0 : i32
    %2 = arith.cmpi ne, %1, %c0_i32_0 : i32
    scf.if %2 {
      %c0_89 = arith.constant 0 : index
      %c0_90 = arith.constant 0 : index
      %c0_91 = arith.constant 0 : index
      %164 = vector.load %arg2[%c0_89, %c0_90, %c0_91] : memref<1x16x64xf32, #tpu.memory_space<vmem>>, vector<1x16x64xf32>
      %c0_92 = arith.constant 0 : index
      %c0_93 = arith.constant 0 : index
      %c0_94 = arith.constant 0 : index
      %165 = vector.load %arg20[%c0_92, %c0_93, %c0_94] : memref<1x16x64xf32, #tpu.memory_space<vmem>>, vector<1x16x64xf32>
      tpu.vector_store %arg20[%c0_92, %c0_93, %c0_94], %164 {strides = array<i32>} : memref<1x16x64xf32, #tpu.memory_space<vmem>>, vector<1x16x64xf32>,
    } else {
    }
    %c0 = arith.constant 0 : index
    %c0_1 = arith.constant 0 : index
    %c0_2 = arith.constant 0 : index
    %3 = vector.load %arg20[%c0, %c0_1, %c0_2] : memref<1x16x64xf32, #tpu.memory_space<vmem>>, vector<1x16x64xf32>
    %c0_3 = arith.constant 0 : index
    %c0_4 = arith.constant 0 : index
    %c0_5 = arith.constant 0 : index
    %4 = vector.load %arg3[%c0_3, %c0_4, %c0_5] : memref<1x16x64xf32, #tpu.memory_space<vmem>>, vector<1x16x64xf32>
    %5 = arith.addf %3, %4 : vector<1x16x64xf32>
    %6 = vector.shape_cast %3 : vector<1x16x64xf32> to vector<16x64xf32>
    %7 = vector.shape_cast %5 : vector<1x16x64xf32> to vector<16x64xf32>
    %c0_6 = arith.constant 0 : index
    %c0_7 = arith.constant 0 : index
    %c0_8 = arith.constant 0 : index
    %8 = vector.load %arg6[%c0_6, %c0_7, %c0_8] : memref<1x1x64xf32, #tpu.memory_space<vmem>>, vector<1x1x64xf32>
    %9 = vector.shape_cast %8 : vector<1x1x64xf32> to vector<1x64xf32>
    %c0_9 = arith.constant 0 : index
    %c0_10 = arith.constant 0 : index
    %c0_11 = arith.constant 0 : index
    %10 = vector.load %arg7[%c0_9, %c0_10, %c0_11] : memref<1x1x64xf32, #tpu.memory_space<vmem>>, vector<1x1x64xf32>
    %11 = vector.shape_cast %10 : vector<1x1x64xf32> to vector<1x64xf32>
    %cst = arith.constant dense<0.000000e+00> : vector<16xf32>
    %12 = vector.multi_reduction <add>, %7, %cst [1] : vector<16x64xf32> to vector<16xf32>
    %13 = vector.shape_cast %12 : vector<16xf32> to vector<16x1xf32>
    %cst_12 = arith.constant 6.400000e+01 : f32
    %14 = vector.broadcast %cst_12 : f32 to vector<16x1xf32>
    %15 = arith.divf %13, %14 : vector<16x1xf32>
    %16 = vector.broadcast %15 : vector<16x1xf32> to vector<16x64xf32>
    %17 = arith.subf %7, %16 : vector<16x64xf32>
    %18 = arith.mulf %17, %17 : vector<16x64xf32>
    %cst_13 = arith.constant dense<0.000000e+00> : vector<16xf32>
    %19 = vector.multi_reduction <add>, %18, %cst_13 [1] : vector<16x64xf32> to vector<16xf32>
    %20 = vector.shape_cast %19 : vector<16xf32> to vector<16x1xf32>
    %cst_14 = arith.constant 6.400000e+01 : f32
    %21 = vector.broadcast %cst_14 : f32 to vector<16x1xf32>
    %22 = arith.divf %20, %21 : vector<16x1xf32>
    %cst_15 = arith.constant 9.99999974E-6 : f32
    %23 = vector.broadcast %cst_15 : f32 to vector<16x1xf32>
    %24 = arith.addf %22, %23 : vector<16x1xf32>
    %25 = math.rsqrt %24 : vector<16x1xf32>
    %26 = vector.broadcast %25 : vector<16x1xf32> to vector<16x64xf32>
    %27 = arith.mulf %17, %26 : vector<16x64xf32>
    %28 = vector.broadcast %9 : vector<1x64xf32> to vector<16x64xf32>
    %29 = arith.mulf %27, %28 : vector<16x64xf32>
    %30 = vector.broadcast %11 : vector<1x64xf32> to vector<16x64xf32>
    %31 = arith.addf %29, %30 : vector<16x64xf32>
    %c0_16 = arith.constant 0 : index
    %c0_17 = arith.constant 0 : index
    %c0_18 = arith.constant 0 : index
    %32 = vector.load %arg6[%c0_16, %c0_17, %c0_18] : memref<1x1x64xf32, #tpu.memory_space<vmem>>, vector<1x1x64xf32>
    %33 = vector.shape_cast %32 : vector<1x1x64xf32> to vector<1x64xf32>
    %c0_19 = arith.constant 0 : index
    %c0_20 = arith.constant 0 : index
    %c0_21 = arith.constant 0 : index
    %34 = vector.load %arg7[%c0_19, %c0_20, %c0_21] : memref<1x1x64xf32, #tpu.memory_space<vmem>>, vector<1x1x64xf32>
    %35 = vector.shape_cast %34 : vector<1x1x64xf32> to vector<1x64xf32>
    %cst_22 = arith.constant dense<0.000000e+00> : vector<16xf32>
    %36 = vector.multi_reduction <add>, %6, %cst_22 [1] : vector<16x64xf32> to vector<16xf32>
    %37 = vector.shape_cast %36 : vector<16xf32> to vector<16x1xf32>
    %cst_23 = arith.constant 6.400000e+01 : f32
    %38 = vector.broadcast %cst_23 : f32 to vector<16x1xf32>
    %39 = arith.divf %37, %38 : vector<16x1xf32>
    %40 = vector.broadcast %39 : vector<16x1xf32> to vector<16x64xf32>
    %41 = arith.subf %6, %40 : vector<16x64xf32>
    %42 = arith.mulf %41, %41 : vector<16x64xf32>
    %cst_24 = arith.constant dense<0.000000e+00> : vector<16xf32>
    %43 = vector.multi_reduction <add>, %42, %cst_24 [1] : vector<16x64xf32> to vector<16xf32>
    %44 = vector.shape_cast %43 : vector<16xf32> to vector<16x1xf32>
    %cst_25 = arith.constant 6.400000e+01 : f32
    %45 = vector.broadcast %cst_25 : f32 to vector<16x1xf32>
    %46 = arith.divf %44, %45 : vector<16x1xf32>
    %cst_26 = arith.constant 9.99999974E-6 : f32
    %47 = vector.broadcast %cst_26 : f32 to vector<16x1xf32>
    %48 = arith.addf %46, %47 : vector<16x1xf32>
    %49 = math.rsqrt %48 : vector<16x1xf32>
    %50 = vector.broadcast %49 : vector<16x1xf32> to vector<16x64xf32>
    %51 = arith.mulf %41, %50 : vector<16x64xf32>
    %52 = vector.broadcast %33 : vector<1x64xf32> to vector<16x64xf32>
    %53 = arith.mulf %51, %52 : vector<16x64xf32>
    %54 = vector.broadcast %35 : vector<1x64xf32> to vector<16x64xf32>
    %55 = arith.addf %53, %54 : vector<16x64xf32>
    %56 = arith.truncf %31 : vector<16x64xf32> to vector<16x64xbf16>
    %c0_27 = arith.constant 0 : index
    %c0_28 = arith.constant 0 : index
    %c0_29 = arith.constant 0 : index
    %57 = vector.load %arg8[%c0_27, %c0_28, %c0_29] : memref<1x64x64xbf16, #tpu.memory_space<vmem>>, vector<1x64x64xbf16>
    %58 = vector.shape_cast %57 : vector<1x64x64xbf16> to vector<64x64xbf16>
    %cst_30 = arith.constant dense<0.000000e+00> : vector<16x64xf32>
    %59 = tpu.matmul %56, %58, %cst_30 {dimension_numbers = #tpu.dot_dimension_numbers<[1], [0], [0], [1], [0, 0, 1, 1], [], []>} : vector<16x64xbf16>, vector<64x64xbf16>, vector<16x64xf32> -> vector<16x64xf32>
    %c0_31 = arith.constant 0 : index
    %c0_32 = arith.constant 0 : index
    %c0_33 = arith.constant 0 : index
    %60 = vector.load %arg9[%c0_31, %c0_32, %c0_33] : memref<1x64x64xbf16, #tpu.memory_space<vmem>>, vector<1x64x64xbf16>
    %61 = vector.shape_cast %60 : vector<1x64x64xbf16> to vector<64x64xbf16>
    %cst_34 = arith.constant dense<0.000000e+00> : vector<16x64xf32>
    %62 = tpu.matmul %56, %61, %cst_34 {dimension_numbers = #tpu.dot_dimension_numbers<[1], [0], [0], [1], [0, 0, 1, 1], [], []>} : vector<16x64xbf16>, vector<64x64xbf16>, vector<16x64xf32> -> vector<16x64xf32>
    %63 = arith.truncf %55 : vector<16x64xf32> to vector<16x64xbf16>
    %c0_35 = arith.constant 0 : index
    %c0_36 = arith.constant 0 : index
    %c0_37 = arith.constant 0 : index
    %64 = vector.load %arg10[%c0_35, %c0_36, %c0_37] : memref<1x64x64xbf16, #tpu.memory_space<vmem>>, vector<1x64x64xbf16>
    %65 = vector.shape_cast %64 : vector<1x64x64xbf16> to vector<64x64xbf16>
    %cst_38 = arith.constant dense<0.000000e+00> : vector<16x64xf32>
    %66 = tpu.matmul %63, %65, %cst_38 {dimension_numbers = #tpu.dot_dimension_numbers<[1], [0], [0], [1], [0, 0, 1, 1], [], []>} : vector<16x64xbf16>, vector<64x64xbf16>, vector<16x64xf32> -> vector<16x64xf32>
    %67 = vector.shape_cast %59 : vector<16x64xf32> to vector<1x16x64xf32>
    %68 = arith.truncf %67 : vector<1x16x64xf32> to vector<1x16x64xbf16>
    %69 = vector.shape_cast %62 : vector<16x64xf32> to vector<1x16x64xf32>
    %70 = vector.shape_cast %66 : vector<16x64xf32> to vector<1x16x64xf32>
    %71 = tpu.concatenate %69, %69, %69, %69, %69, %69, %69, %69 in 1 : vector<1x16x64xf32>, vector<1x16x64xf32>, vector<1x16x64xf32>, vector<1x16x64xf32>, vector<1x16x64xf32>, vector<1x16x64xf32>, vector<1x16x64xf32>, vector<1x16x64xf32> -> vector<1x128x64xf32>
    %c0_39 = arith.constant 0 : index
    %c0_40 = arith.constant 0 : index
    %72 = vector.load %arg4[%c0_39, %c0_40] : memref<128x64xf32, #tpu.memory_space<vmem>>, vector<128x64xf32>
    %73 = vector.shape_cast %72 : vector<128x64xf32> to vector<1x128x64xf32>
    %74 = arith.mulf %71, %73 : vector<1x128x64xf32>
    %75 = arith.truncf %74 : vector<1x128x64xf32> to vector<1x128x64xbf16>
    %76 = tpu.concatenate %70, %70, %70, %70, %70, %70, %70, %70 in 1 : vector<1x16x64xf32>, vector<1x16x64xf32>, vector<1x16x64xf32>, vector<1x16x64xf32>, vector<1x16x64xf32>, vector<1x16x64xf32>, vector<1x16x64xf32>, vector<1x16x64xf32> -> vector<1x128x64xf32>
    %c0_41 = arith.constant 0 : index
    %c0_42 = arith.constant 0 : index
    %77 = vector.load %arg4[%c0_41, %c0_42] : memref<128x64xf32, #tpu.memory_space<vmem>>, vector<128x64xf32>
    %78 = vector.shape_cast %77 : vector<128x64xf32> to vector<1x128x64xf32>
    %79 = arith.mulf %76, %78 : vector<1x128x64xf32>
    %80 = arith.truncf %79 : vector<1x128x64xf32> to vector<1x128x64xbf16>
    "tpu.trace_start"() <{level = 10 : i32, message = "bnd,bmd->bnm"}> : () -> ()
    %cst_43 = arith.constant dense<0.000000e+00> : vector<1x16x128xf32>
    %81 = tpu.matmul %68, %75, %cst_43 {dimension_numbers = #tpu.dot_dimension_numbers<[2], [2], [1], [1], [0, 0, 0, 1, 1, 1], [0], [0]>} : vector<1x16x64xbf16>, vector<1x128x64xbf16>, vector<1x16x128xf32> -> vector<1x16x128xf32>
    "tpu.trace_stop"() : () -> ()
    %82 = vector.shape_cast %81 : vector<1x16x128xf32> to vector<16x128xf32>
    %cst_44 = arith.constant dense<0xFF800000> : vector<16xf32>
    %83 = vector.multi_reduction <maximumf>, %82, %cst_44 [1] : vector<16x128xf32> to vector<16xf32>
    %84 = vector.shape_cast %83 : vector<16xf32> to vector<16x1xf32>
    %85 = vector.broadcast %84 : vector<16x1xf32> to vector<16x128xf32>
    %86 = arith.subf %82, %85 : vector<16x128xf32>
    %87 = math.exp %86 : vector<16x128xf32>
    %c0_45 = arith.constant 0 : index
    %c0_46 = arith.constant 0 : index
    %88 = vector.load %arg5[%c0_45, %c0_46] : memref<128x128xf32, #tpu.memory_space<vmem>>, vector<128x128xf32>
    %cst_47 = arith.constant dense<0.000000e+00> : vector<16x128xf32>
    %89 = tpu.matmul %87, %88, %cst_47 {dimension_numbers = #tpu.dot_dimension_numbers<[1], [0], [0], [1], [0, 0, 1, 1], [], []>} : vector<16x128xf32>, vector<128x128xf32>, vector<16x128xf32> -> vector<16x128xf32>
    %90 = tpu.reciprocal %89 {approx = true} : vector<16x128xf32> -> vector<16x128xf32>
    %91 = arith.mulf %87, %90 : vector<16x128xf32>
    %92 = arith.truncf %91 : vector<16x128xf32> to vector<16x128xbf16>
    %93 = vector.shape_cast %92 : vector<16x128xbf16> to vector<1x16x128xbf16>
    "tpu.trace_start"() <{level = 10 : i32, message = "bnm,bmd->bnd"}> : () -> ()
    %cst_48 = arith.constant dense<0.000000e+00> : vector<1x16x64xf32>
    %94 = tpu.matmul %93, %80, %cst_48 {dimension_numbers = #tpu.dot_dimension_numbers<[2], [1], [1], [2], [0, 0, 0, 1, 1, 2], [0], [0]>} : vector<1x16x128xbf16>, vector<1x128x64xbf16>, vector<1x16x64xf32> -> vector<1x16x64xf32>
    "tpu.trace_stop"() : () -> ()
    %95 = vector.shape_cast %94 : vector<1x16x64xf32> to vector<16x64xf32>
    %96 = arith.truncf %95 : vector<16x64xf32> to vector<16x64xbf16>
    %c0_49 = arith.constant 0 : index
    %c0_50 = arith.constant 0 : index
    %c0_51 = arith.constant 0 : index
    %97 = vector.load %arg11[%c0_49, %c0_50, %c0_51] : memref<1x64x64xbf16, #tpu.memory_space<vmem>>, vector<1x64x64xbf16>
    %98 = vector.shape_cast %97 : vector<1x64x64xbf16> to vector<64x64xbf16>
    %cst_52 = arith.constant dense<0.000000e+00> : vector<16x64xf32>
    %99 = tpu.matmul %96, %98, %cst_52 {dimension_numbers = #tpu.dot_dimension_numbers<[1], [0], [0], [1], [0, 0, 1, 1], [], []>} : vector<16x64xbf16>, vector<64x64xbf16>, vector<16x64xf32> -> vector<16x64xf32>
    %c0_53 = arith.constant 0 : index
    %c0_54 = arith.constant 0 : index
    %c0_55 = arith.constant 0 : index
    %100 = vector.load %arg12[%c0_53, %c0_54, %c0_55] : memref<1x1x64xf32, #tpu.memory_space<vmem>>, vector<1x1x64xf32>
    %101 = vector.shape_cast %100 : vector<1x1x64xf32> to vector<1x64xf32>
    %102 = vector.broadcast %101 : vector<1x64xf32> to vector<16x64xf32>
    %103 = arith.addf %99, %102 : vector<16x64xf32>
    %104 = arith.addf %103, %7 : vector<16x64xf32>
    %c0_56 = arith.constant 0 : index
    %c0_57 = arith.constant 0 : index
    %c0_58 = arith.constant 0 : index
    %105 = vector.load %arg13[%c0_56, %c0_57, %c0_58] : memref<1x1x64xf32, #tpu.memory_space<vmem>>, vector<1x1x64xf32>
    %106 = vector.shape_cast %105 : vector<1x1x64xf32> to vector<1x64xf32>
    %c0_59 = arith.constant 0 : index
    %c0_60 = arith.constant 0 : index
    %c0_61 = arith.constant 0 : index
    %107 = vector.load %arg14[%c0_59, %c0_60, %c0_61] : memref<1x1x64xf32, #tpu.memory_space<vmem>>, vector<1x1x64xf32>
    %108 = vector.shape_cast %107 : vector<1x1x64xf32> to vector<1x64xf32>
    %cst_62 = arith.constant dense<0.000000e+00> : vector<16xf32>
    %109 = vector.multi_reduction <add>, %104, %cst_62 [1] : vector<16x64xf32> to vector<16xf32>
    %110 = vector.shape_cast %109 : vector<16xf32> to vector<16x1xf32>
    %cst_63 = arith.constant 6.400000e+01 : f32
    %111 = vector.broadcast %cst_63 : f32 to vector<16x1xf32>
    %112 = arith.divf %110, %111 : vector<16x1xf32>
    %113 = vector.broadcast %112 : vector<16x1xf32> to vector<16x64xf32>
    %114 = arith.subf %104, %113 : vector<16x64xf32>
    %115 = arith.mulf %114, %114 : vector<16x64xf32>
    %cst_64 = arith.constant dense<0.000000e+00> : vector<16xf32>
    %116 = vector.multi_reduction <add>, %115, %cst_64 [1] : vector<16x64xf32> to vector<16xf32>
    %117 = vector.shape_cast %116 : vector<16xf32> to vector<16x1xf32>
    %cst_65 = arith.constant 6.400000e+01 : f32
    %118 = vector.broadcast %cst_65 : f32 to vector<16x1xf32>
    %119 = arith.divf %117, %118 : vector<16x1xf32>
    %cst_66 = arith.constant 9.99999974E-6 : f32
    %120 = vector.broadcast %cst_66 : f32 to vector<16x1xf32>
    %121 = arith.addf %119, %120 : vector<16x1xf32>
    %122 = math.rsqrt %121 : vector<16x1xf32>
    %123 = vector.broadcast %122 : vector<16x1xf32> to vector<16x64xf32>
    %124 = arith.mulf %114, %123 : vector<16x64xf32>
    %125 = vector.broadcast %106 : vector<1x64xf32> to vector<16x64xf32>
    %126 = arith.mulf %124, %125 : vector<16x64xf32>
    %127 = vector.broadcast %108 : vector<1x64xf32> to vector<16x64xf32>
    %128 = arith.addf %126, %127 : vector<16x64xf32>
    %129 = arith.truncf %128 : vector<16x64xf32> to vector<16x64xbf16>
    %c0_67 = arith.constant 0 : index
    %c0_68 = arith.constant 0 : index
    %c0_69 = arith.constant 0 : index
    %130 = vector.load %arg15[%c0_67, %c0_68, %c0_69] : memref<1x64x128xbf16, #tpu.memory_space<vmem>>, vector<1x64x128xbf16>
    %131 = vector.shape_cast %130 : vector<1x64x128xbf16> to vector<64x128xbf16>
    %cst_70 = arith.constant dense<0.000000e+00> : vector<16x128xf32>
    %132 = tpu.matmul %129, %131, %cst_70 {dimension_numbers = #tpu.dot_dimension_numbers<[1], [0], [0], [1], [0, 0, 1, 1], [], []>} : vector<16x64xbf16>, vector<64x128xbf16>, vector<16x128xf32> -> vector<16x128xf32>
    %c0_71 = arith.constant 0 : index
    %c0_72 = arith.constant 0 : index
    %c0_73 = arith.constant 0 : index
    %133 = vector.load %arg16[%c0_71, %c0_72, %c0_73] : memref<1x1x128xf32, #tpu.memory_space<vmem>>, vector<1x1x128xf32>
    %134 = vector.shape_cast %133 : vector<1x1x128xf32> to vector<1x128xf32>
    %135 = vector.broadcast %134 : vector<1x128xf32> to vector<16x128xf32>
    %136 = arith.addf %132, %135 : vector<16x128xf32>
    %cst_74 = arith.constant 5.000000e-01 : f32
    %137 = vector.broadcast %cst_74 : f32 to vector<16x128xf32>
    %138 = arith.mulf %137, %136 : vector<16x128xf32>
    %cst_75 = arith.constant 4.471500e-02 : f32
    %139 = vector.broadcast %cst_75 : f32 to vector<16x128xf32>
    %140 = arith.mulf %139, %136 : vector<16x128xf32>
    %141 = arith.mulf %140, %136 : vector<16x128xf32>
    %142 = arith.mulf %141, %136 : vector<16x128xf32>
    %143 = arith.addf %136, %142 : vector<16x128xf32>
    %cst_76 = arith.constant 0.797884583 : f32
    %144 = vector.broadcast %cst_76 : f32 to vector<16x128xf32>
    %145 = arith.mulf %144, %143 : vector<16x128xf32>
    %146 = math.tanh %145 : vector<16x128xf32>
    %cst_77 = arith.constant 1.000000e+00 : f32
    %147 = vector.broadcast %cst_77 : f32 to vector<16x128xf32>
    %148 = arith.addf %147, %146 : vector<16x128xf32>
    %149 = arith.mulf %138, %148 : vector<16x128xf32>
    %150 = arith.truncf %149 : vector<16x128xf32> to vector<16x128xbf16>
    %c0_78 = arith.constant 0 : index
    %c0_79 = arith.constant 0 : index
    %c0_80 = arith.constant 0 : index
    %151 = vector.load %arg17[%c0_78, %c0_79, %c0_80] : memref<1x128x64xbf16, #tpu.memory_space<vmem>>, vector<1x128x64xbf16>
    %152 = vector.shape_cast %151 : vector<1x128x64xbf16> to vector<128x64xbf16>
    %cst_81 = arith.constant dense<0.000000e+00> : vector<16x64xf32>
    %153 = tpu.matmul %150, %152, %cst_81 {dimension_numbers = #tpu.dot_dimension_numbers<[1], [0], [0], [1], [0, 0, 1, 1], [], []>} : vector<16x128xbf16>, vector<128x64xbf16>, vector<16x64xf32> -> vector<16x64xf32>
    %c0_82 = arith.constant 0 : index
    %c0_83 = arith.constant 0 : index
    %c0_84 = arith.constant 0 : index
    %154 = vector.load %arg18[%c0_82, %c0_83, %c0_84] : memref<1x1x64xf32, #tpu.memory_space<vmem>>, vector<1x1x64xf32>
    %155 = vector.shape_cast %154 : vector<1x1x64xf32> to vector<1x64xf32>
    %156 = vector.broadcast %155 : vector<1x64xf32> to vector<16x64xf32>
    %157 = arith.addf %153, %156 : vector<16x64xf32>
    %158 = arith.addf %157, %104 : vector<16x64xf32>
    %159 = vector.shape_cast %158 : vector<16x64xf32> to vector<1x16x64xf32>
    %c0_85 = arith.constant 0 : index
    %c0_86 = arith.constant 0 : index
    %c0_87 = arith.constant 0 : index
    %160 = vector.load %arg20[%c0_85, %c0_86, %c0_87] : memref<1x16x64xf32, #tpu.memory_space<vmem>>, vector<1x16x64xf32>
    tpu.vector_store %arg20[%c0_85, %c0_86, %c0_87], %159 {strides = array<i32>} : memref<1x16x64xf32, #tpu.memory_space<vmem>>, vector<1x16x64xf32>,
    %c1_i32 = arith.constant 1 : i32
    %161 = arith.cmpi eq, %arg1, %c1_i32 : i32
    %162 = arith.extui %161 : i1 to i32
    %c0_i32_88 = arith.constant 0 : i32
    %163 = arith.cmpi ne, %162, %c0_i32_88 : i32
    scf.if %163 {
      %c0_89 = arith.constant 0 : index
      %c0_90 = arith.constant 0 : index
      %c0_91 = arith.constant 0 : index
      %164 = vector.load %arg19[%c0_89, %c0_90, %c0_91] : memref<1x16x64xf32, #tpu.memory_space<vmem>>, vector<1x16x64xf32>
      tpu.vector_store %arg19[%c0_89, %c0_90, %c0_91], %159 {strides = array<i32>} : memref<1x16x64xf32, #tpu.memory_space<vmem>>, vector<1x16x64xf32>,
    } else {
    }
    return
  }
  func.func @transform_0(%arg0: i32, %arg1: i32) -> (i32, i32, i32) {
    %c0_i32 = arith.constant 0 : i32
    %c0_i32_0 = arith.constant 0 : i32
    %c0_i32_1 = arith.constant 0 : i32
    return %arg0, %c0_i32, %c0_i32_0 : i32, i32, i32
  }
  func.func @transform_1(%arg0: i32, %arg1: i32) -> (i32, i32, i32) {
    %c0_i32 = arith.constant 0 : i32
    %c0_i32_0 = arith.constant 0 : i32
    %c0_i32_1 = arith.constant 0 : i32
    %c0_i32_2 = arith.constant 0 : i32
    return %c0_i32, %c0_i32_0, %c0_i32_1 : i32, i32, i32
  }
  func.func @transform_2(%arg0: i32, %arg1: i32) -> (i32, i32) {
    %c0_i32 = arith.constant 0 : i32
    %c0_i32_0 = arith.constant 0 : i32
    %c0_i32_1 = arith.constant 0 : i32
    return %c0_i32, %c0_i32_0 : i32, i32
  }
  func.func @transform_3(%arg0: i32, %arg1: i32) -> (i32, i32) {
    %c0_i32 = arith.constant 0 : i32
    %c0_i32_0 = arith.constant 0 : i32
    %c0_i32_1 = arith.constant 0 : i32
    return %c0_i32, %c0_i32_0 : i32, i32
  }
  func.func @transform_4(%arg0: i32, %arg1: i32) -> (i32, i32, i32) {
    %c0_i32 = arith.constant 0 : i32
    %c0_i32_0 = arith.constant 0 : i32
    %c0_i32_1 = arith.constant 0 : i32
    return %arg1, %c0_i32, %c0_i32_0 : i32, i32, i32
  }
  func.func @transform_5(%arg0: i32, %arg1: i32) -> (i32, i32, i32) {
    %c0_i32 = arith.constant 0 : i32
    %c0_i32_0 = arith.constant 0 : i32
    %c0_i32_1 = arith.constant 0 : i32
    return %arg1, %c0_i32, %c0_i32_0 : i32, i32, i32
  }
  func.func @transform_6(%arg0: i32, %arg1: i32) -> (i32, i32, i32) {
    %c0_i32 = arith.constant 0 : i32
    %c0_i32_0 = arith.constant 0 : i32
    %c0_i32_1 = arith.constant 0 : i32
    return %arg1, %c0_i32, %c0_i32_0 : i32, i32, i32
  }
  func.func @transform_7(%arg0: i32, %arg1: i32) -> (i32, i32, i32) {
    %c0_i32 = arith.constant 0 : i32
    %c0_i32_0 = arith.constant 0 : i32
    %c0_i32_1 = arith.constant 0 : i32
    return %arg1, %c0_i32, %c0_i32_0 : i32, i32, i32
  }
  func.func @transform_8(%arg0: i32, %arg1: i32) -> (i32, i32, i32) {
    %c0_i32 = arith.constant 0 : i32
    %c0_i32_0 = arith.constant 0 : i32
    %c0_i32_1 = arith.constant 0 : i32
    return %arg1, %c0_i32, %c0_i32_0 : i32, i32, i32
  }
  func.func @transform_9(%arg0: i32, %arg1: i32) -> (i32, i32, i32) {
    %c0_i32 = arith.constant 0 : i32
    %c0_i32_0 = arith.constant 0 : i32
    %c0_i32_1 = arith.constant 0 : i32
    return %arg1, %c0_i32, %c0_i32_0 : i32, i32, i32
  }
  func.func @transform_10(%arg0: i32, %arg1: i32) -> (i32, i32, i32) {
    %c0_i32 = arith.constant 0 : i32
    %c0_i32_0 = arith.constant 0 : i32
    %c0_i32_1 = arith.constant 0 : i32
    return %arg1, %c0_i32, %c0_i32_0 : i32, i32, i32
  }
  func.func @transform_11(%arg0: i32, %arg1: i32) -> (i32, i32, i32) {
    %c0_i32 = arith.constant 0 : i32
    %c0_i32_0 = arith.constant 0 : i32
    %c0_i32_1 = arith.constant 0 : i32
    return %arg1, %c0_i32, %c0_i32_0 : i32, i32, i32
  }
  func.func @transform_12(%arg0: i32, %arg1: i32) -> (i32, i32, i32) {
    %c0_i32 = arith.constant 0 : i32
    %c0_i32_0 = arith.constant 0 : i32
    %c0_i32_1 = arith.constant 0 : i32
    return %arg1, %c0_i32, %c0_i32_0 : i32, i32, i32
  }
  func.func @transform_13(%arg0: i32, %arg1: i32) -> (i32, i32, i32) {
    %c0_i32 = arith.constant 0 : i32
    %c0_i32_0 = arith.constant 0 : i32
    %c0_i32_1 = arith.constant 0 : i32
    return %arg1, %c0_i32, %c0_i32_0 : i32, i32, i32
  }
  func.func @transform_14(%arg0: i32, %arg1: i32) -> (i32, i32, i32) {
    %c0_i32 = arith.constant 0 : i32
    %c0_i32_0 = arith.constant 0 : i32
    %c0_i32_1 = arith.constant 0 : i32
    return %arg1, %c0_i32, %c0_i32_0 : i32, i32, i32
  }
  func.func @transform_15(%arg0: i32, %arg1: i32) -> (i32, i32, i32) {
    %c0_i32 = arith.constant 0 : i32
    %c0_i32_0 = arith.constant 0 : i32
    %c0_i32_1 = arith.constant 0 : i32
    return %arg1, %c0_i32, %c0_i32_0 : i32, i32, i32
  }
  func.func @transform_16(%arg0: i32, %arg1: i32) -> (i32, i32, i32) {
    %c0_i32 = arith.constant 0 : i32
    %c0_i32_0 = arith.constant 0 : i32
    %c0_i32_1 = arith.constant 0 : i32
    return %arg1, %c0_i32, %c0_i32_0 : i32, i32, i32
  }
  func.func @transform_17(%arg0: i32, %arg1: i32) -> (i32, i32, i32) {
    %c0_i32 = arith.constant 0 : i32
    %c0_i32_0 = arith.constant 0 : i32
    %c0_i32_1 = arith.constant 0 : i32
    return %arg0, %c0_i32, %c0_i32_0 : i32, i32, i32
  }
}

</mosaic_0001>

<llo_original>
// kernel: transformer_encoder_pallas.1
$region0: #{transformer_encoder_pallas.1}
  #allocation0 [shape = 'u32[]', space=smem, size = 0x4, offset = 0x4, fixed_abs, tag = 'smem constant byte address 0x4 - core index']
  #allocation1 [shape = 'u32[144,128]{1,0:T(1,128)}', space=vmem, size = 0x12000, scoped, tag = 'internal scratch']
  #allocation2 [shape = 'f32[1,16,64]{2,1,0:T(8,128)}', space=vmem, size = 0x2000, scoped, tag = 'scratch operand']
  %s0 = inlined_call_operand.hbm [shape: f32[2,16,64], index: 0, kind: input, shape index: {}]
  %s1 = inlined_call_operand.vmem [shape: f32[1,16,64], index: 1, kind: input, shape index: {}]
  %s2 = inlined_call_operand.vmem [shape: f32[128,64], index: 2, kind: input, shape index: {}]
  %s3 = inlined_call_operand.vmem [shape: f32[128,128], index: 3, kind: input, shape index: {}]
  %s4 = inlined_call_operand.vmem [shape: f32[2,1,64], index: 4, kind: input, shape index: {}]
  %s5 = inlined_call_operand.vmem [shape: f32[2,1,64], index: 5, kind: input, shape index: {}]
  %s6 = inlined_call_operand.vmem [shape: bf16[2,64,64], index: 6, kind: input, shape index: {}]
  %s7 = inlined_call_operand.vmem [shape: bf16[2,64,64], index: 7, kind: input, shape index: {}]
  %s8 = inlined_call_operand.vmem [shape: bf16[2,64,64], index: 8, kind: input, shape index: {}]
  %s9 = inlined_call_operand.hbm [shape: bf16[2,64,64], index: 9, kind: input, shape index: {}]
  %s10 = inlined_call_operand.vmem [shape: f32[2,1,64], index: 10, kind: input, shape index: {}]
  %s11 = inlined_call_operand.hbm [shape: f32[2,1,64], index: 11, kind: input, shape index: {}]
  %s12 = inlined_call_operand.hbm [shape: f32[2,1,64], index: 12, kind: input, shape index: {}]
  %s13 = inlined_call_operand.hbm [shape: bf16[2,64,128], index: 13, kind: input, shape index: {}]
  %s14 = inlined_call_operand.hbm [shape: f32[2,1,128], index: 14, kind: input, shape index: {}]
  %s15 = inlined_call_operand.vmem [shape: bf16[2,128,64], index: 15, kind: input, shape index: {}]
  %s16 = inlined_call_operand.hbm [shape: f32[2,1,64], index: 16, kind: input, shape index: {}]
  %s17 = inlined_call_operand.hbm [shape: f32[2,16,64], index: 17, kind: output, shape index: {}]
  %s18 = sld [smem:[#allocation0]]
  $region137: #{transformer_encoder_pallas.1} parent=0
    _
  %s20 = ssub.s32 1, %s18
  %s21 = scalar_select 0, %s20, %s18
  $region1: #{transformer_encoder_pallas.1} parent=0
    #allocation3 [shape = 'u8[16384]{0}', space=vmem, size = 0x4000, scoped, tag = 'input window, operand 0']
    #allocation4 [shape = 's32[2]{0}', space=sflag, size = 0x8, scoped, tag = 'scoped memory for transformer_encoder_pallas.1']
    #allocation5 [shape = 's32[2]{0}', space=sflag, size = 0x8, scoped, tag = 'scoped memory for transformer_encoder_pallas.1']
    #allocation6 [shape = 'u8[32768]{0}', space=vmem, size = 0x8000, scoped, tag = 'input window, operand 9']
    #allocation7 [shape = 's32[2]{0}', space=sflag, size = 0x8, scoped, tag = 'scoped memory for transformer_encoder_pallas.1']
    #allocation8 [shape = 'u8[1024]{0}', space=vmem, size = 0x400, scoped, tag = 'input window, operand 11']
    #allocation9 [shape = 'u8[1024]{0}', space=vmem, size = 0x400, scoped, tag = 'input window, operand 12']
    #allocation10 [shape = 's32[2]{0}', space=sflag, size = 0x8, scoped, tag = 'scoped memory for transformer_encoder_pallas.1']
    #allocation11 [shape = 'u8[32768]{0}', space=vmem, size = 0x8000, scoped, tag = 'input window, operand 13']
    #allocation12 [shape = 'u8[1024]{0}', space=vmem, size = 0x400, scoped, tag = 'input window, operand 14']
    #allocation13 [shape = 's32[2]{0}', space=sflag, size = 0x8, scoped, tag = 'scoped memory for transformer_encoder_pallas.1']
    #allocation14 [shape = 'u8[1024]{0}', space=vmem, size = 0x400, scoped, tag = 'input window, operand 16']
    #allocation15 [shape = 'u8[16384]{0}', space=vmem, size = 0x4000, scoped, tag = 'output window, operand 0']
    %22 = vsyncpa [#allocation4], 0
    %s23 = scalar_lea.sflag [#allocation4], 1
    %24 = vsyncpa %s23, 0
    %25 = vsyncpa [#allocation7], 0
    %s26 = scalar_lea.sflag [#allocation7], 1
    %27 = vsyncpa %s26, 0
    %28 = vsyncpa [#allocation10], 0
    %s29 = scalar_lea.sflag [#allocation10], 1
    %30 = vsyncpa %s29, 0
    %31 = vsyncpa [#allocation13], 0
    %s32 = scalar_lea.sflag [#allocation13], 1
    %33 = vsyncpa %s32, 0
    %34 = vsyncpa [#allocation5], 0
    %s35 = scalar_lea.sflag [#allocation5], 1
    %36 = vsyncpa %s35, 0
    loop: start=0, step=1, limit=6
    $region2: #{transformer_encoder_pallas.1} parent=1 // loop_pre_header
      _
    $region3: #{transformer_encoder_pallas.1} parent=1 // loop_header
      %s38 = sphi 0, %s42
      %p39 = scmp.ge.s32.totalorder %s38, 6
      %s45 = sphi 0, %s57
      %s46 = sphi 0, %s53
      %s47 = sphi 0, %s45
      %s48 = sphi 0, %s46
      %s49 = sphi 0, %s47
      %s50 = sphi 0, %s48
      %s60 = sphi 0, %s62
      %s63 = sphi 0, %s60
      %s64 = sphi 0, %s63
      %s80 = sphi 0, %s64
      %s84 = sphi 0, %s84
      %s86 = sphi 0, %s84
      %s87 = sphi 0, %s86
      %s101 = sphi 0, %s87
      %s105 = sphi 0, %s105
      %s107 = sphi 0, %s105
      %s108 = sphi 0, %s107
      %s122 = sphi 0, %s108
      %s126 = sphi 0, %s126
      %s128 = sphi 0, %s126
      %s129 = sphi 0, %s128
      %s143 = sphi 0, %s129
      %s149 = sphi 0, %s151
      %s152 = sphi 0, %s149
      %s153 = sphi 0, %s152
      %s169 = sphi 0, %s153
      %s175 = sphi 0, %s177
      %s178 = sphi 0, %s175
      %s179 = sphi 0, %s178
      %s195 = sphi 0, %s179
      %s201 = sphi 0, %s203
      %s204 = sphi 0, %s201
      %s205 = sphi 0, %s204
      %s221 = sphi 0, %s205
      %s227 = sphi 0, %s229
      %s230 = sphi 0, %s227
      %s231 = sphi 0, %s230
      %s247 = sphi 0, %s231
      %s253 = sphi 0, %s255
      %s256 = sphi 0, %s253
      %s257 = sphi 0, %s256
      %s273 = sphi 0, %s257
      %s279 = sphi 0, %s281
      %s282 = sphi 0, %s279
      %s283 = sphi 0, %s282
      %s299 = sphi 0, %s283
      %s305 = sphi 0, %s307
      %s308 = sphi 0, %s305
      %s309 = sphi 0, %s308
      %s325 = sphi 0, %s309
      %s331 = sphi 0, %s333
      %s334 = sphi 0, %s331
      %s335 = sphi 0, %s334
      %s351 = sphi 0, %s335
      %s357 = sphi 0, %s359
      %s360 = sphi 0, %s357
      %s361 = sphi 0, %s360
      %s377 = sphi 0, %s361
      %s383 = sphi 0, %s385
      %s386 = sphi 0, %s383
      %s387 = sphi 0, %s386
      %s403 = sphi 0, %s387
      %s409 = sphi 0, %s411
      %s412 = sphi 0, %s409
      %s413 = sphi 0, %s412
      %s429 = sphi 0, %s413
      %s435 = sphi 0, %s437
      %s438 = sphi 0, %s435
      %s439 = sphi 0, %s438
      %s455 = sphi 0, %s439
      %s461 = sphi 0, %s463
      %s464 = sphi 0, %s461
      %s465 = sphi 0, %s464
      %s481 = sphi 0, %s465
      %s487 = sphi 0, %s489
      %s490 = sphi 0, %s487
      %s491 = sphi 0, %s490
      %s507 = sphi 0, %s491
    $region4: #{transformer_encoder_pallas.1} parent=1 // loop_header_branch
      %41 = sbr.rel (%p39) target = $region8
    $region5: #{transformer_encoder_pallas.1} parent=1 // loop_body
      %s43 = ssub.s32 %s38, 1
      %s44 = ssub.s32 %s38, 2
      %s51 = sadd.s32 1, %s46
      %p52 = scmp.ge.s32.totalorder %s51, 2
      %s53 = scalar_select %p52, 0, %s51
      %s54 = sadd.s32 1, %s45
      %s55 = scalar_select %p52, %s54, %s45
      %p56 = scmp.ge.s32.totalorder %s55, 2
      %s57 = scalar_select %p56, 0, %s55
      %s58 = ssub.s32 %s45, %s57
      %p59 = scmp.eq.s32.totalorder %s58, 0
      %s61 = sadd.s32 %s60, 1
      %s62 = scalar_select %p59, %s60, %s61
      %p65 = pneg %p59
      %p66 = scmp.eq.s32.totalorder %s38, 3
      %p67 = por %p65, %p66
      %p68 = scmp.ne.s32.totalorder %s60, %s63
      %p69 = scmp.eq.s32.totalorder %s38, 0
      %p70 = por %p68, %p69
      %p71 = scmp.ne.s32.totalorder %s60, %s63
      %p72 = scmp.eq.s32.totalorder %s43, 3
      %p73 = por %p71, %p72
      %p74 = scmp.ne.s32.totalorder %s63, %s64
      %p75 = scmp.eq.s32.totalorder %s43, 0
      %p76 = por %p74, %p75
      %p77 = scmp.ne.s32.totalorder %s63, %s64
      %p78 = scmp.eq.s32.totalorder %s44, 3
      %p79 = por %p77, %p78
      %p81 = scmp.ne.s32.totalorder %s64, %s80
      %p82 = scmp.eq.s32.totalorder %s44, 0
      %p83 = por %p81, %p82
      %s85 = sadd.s32 %s84, 1
      %p88 = scmp.eq.s32.totalorder %s38, 3
      %p89 = scmp.ne.s32.totalorder %s84, %s86
      %p90 = scmp.eq.s32.totalorder %s38, 0
      %p91 = por %p89, %p90
      %p92 = scmp.ne.s32.totalorder %s84, %s86
      %p93 = scmp.eq.s32.totalorder %s43, 3
      %p94 = por %p92, %p93
      %p95 = scmp.ne.s32.totalorder %s86, %s87
      %p96 = scmp.eq.s32.totalorder %s43, 0
      %p97 = por %p95, %p96
      %p98 = scmp.ne.s32.totalorder %s86, %s87
      %p99 = scmp.eq.s32.totalorder %s44, 3
      %p100 = por %p98, %p99
      %p102 = scmp.ne.s32.totalorder %s87, %s101
      %p103 = scmp.eq.s32.totalorder %s44, 0
      %p104 = por %p102, %p103
      %s106 = sadd.s32 %s105, 1
      %p109 = scmp.eq.s32.totalorder %s38, 3
      %p110 = scmp.ne.s32.totalorder %s105, %s107
      %p111 = scmp.eq.s32.totalorder %s38, 0
      %p112 = por %p110, %p111
      %p113 = scmp.ne.s32.totalorder %s105, %s107
      %p114 = scmp.eq.s32.totalorder %s43, 3
      %p115 = por %p113, %p114
      %p116 = scmp.ne.s32.totalorder %s107, %s108
      %p117 = scmp.eq.s32.totalorder %s43, 0
      %p118 = por %p116, %p117
      %p119 = scmp.ne.s32.totalorder %s107, %s108
      %p120 = scmp.eq.s32.totalorder %s44, 3
      %p121 = por %p119, %p120
      %p123 = scmp.ne.s32.totalorder %s108, %s122
      %p124 = scmp.eq.s32.totalorder %s44, 0
      %p125 = por %p123, %p124
      %s127 = sadd.s32 %s126, 1
      %p130 = scmp.eq.s32.totalorder %s38, 3
      %p131 = scmp.ne.s32.totalorder %s126, %s128
      %p132 = scmp.eq.s32.totalorder %s38, 0
      %p133 = por %p131, %p132
      %p134 = scmp.ne.s32.totalorder %s126, %s128
      %p135 = scmp.eq.s32.totalorder %s43, 3
      %p136 = por %p134, %p135
      %p137 = scmp.ne.s32.totalorder %s128, %s129
      %p138 = scmp.eq.s32.totalorder %s43, 0
      %p139 = por %p137, %p138
      %p140 = scmp.ne.s32.totalorder %s128, %s129
      %p141 = scmp.eq.s32.totalorder %s44, 3
      %p142 = por %p140, %p141
      %p144 = scmp.ne.s32.totalorder %s129, %s143
      %p145 = scmp.eq.s32.totalorder %s44, 0
      %p146 = por %p144, %p145
      %s147 = ssub.s32 %s46, %s53
      %p148 = scmp.eq.s32.totalorder %s147, 0
      %s150 = sadd.s32 %s149, 1
      %s151 = scalar_select %p148, %s149, %s150
      %p154 = pneg %p148
      %p155 = scmp.eq.s32.totalorder %s38, 3
      %p156 = por %p154, %p155
      %p157 = scmp.ne.s32.totalorder %s149, %s152
      %p158 = scmp.eq.s32.totalorder %s38, 0
      %p159 = por %p157, %p158
      %p160 = scmp.ne.s32.totalorder %s149, %s152
      %p161 = scmp.eq.s32.totalorder %s43, 3
      %p162 = por %p160, %p161
      %p163 = scmp.ne.s32.totalorder %s152, %s153
      %p164 = scmp.eq.s32.totalorder %s43, 0
      %p165 = por %p163, %p164
      %p166 = scmp.ne.s32.totalorder %s152, %s153
      %p167 = scmp.eq.s32.totalorder %s44, 3
      %p168 = por %p166, %p167
      %p170 = scmp.ne.s32.totalorder %s153, %s169
      %p171 = scmp.eq.s32.totalorder %s44, 0
      %p172 = por %p170, %p171
      %s173 = ssub.s32 %s46, %s53
      %p174 = scmp.eq.s32.totalorder %s173, 0
      %s176 = sadd.s32 %s175, 1
      %s177 = scalar_select %p174, %s175, %s176
      %p180 = pneg %p174
      %p181 = scmp.eq.s32.totalorder %s38, 3
      %p182 = por %p180, %p181
      %p183 = scmp.ne.s32.totalorder %s175, %s178
      %p184 = scmp.eq.s32.totalorder %s38, 0
      %p185 = por %p183, %p184
      %p186 = scmp.ne.s32.totalorder %s175, %s178
      %p187 = scmp.eq.s32.totalorder %s43, 3
      %p188 = por %p186, %p187
      %p189 = scmp.ne.s32.totalorder %s178, %s179
      %p190 = scmp.eq.s32.totalorder %s43, 0
      %p191 = por %p189, %p190
      %p192 = scmp.ne.s32.totalorder %s178, %s179
      %p193 = scmp.eq.s32.totalorder %s44, 3
      %p194 = por %p192, %p193
      %p196 = scmp.ne.s32.totalorder %s179, %s195
      %p197 = scmp.eq.s32.totalorder %s44, 0
      %p198 = por %p196, %p197
      %s199 = ssub.s32 %s46, %s53
      %p200 = scmp.eq.s32.totalorder %s199, 0
      %s202 = sadd.s32 %s201, 1
      %s203 = scalar_select %p200, %s201, %s202
      %p206 = pneg %p200
      %p207 = scmp.eq.s32.totalorder %s38, 3
      %p208 = por %p206, %p207
      %p209 = scmp.ne.s32.totalorder %s201, %s204
      %p210 = scmp.eq.s32.totalorder %s38, 0
      %p211 = por %p209, %p210
      %p212 = scmp.ne.s32.totalorder %s201, %s204
      %p213 = scmp.eq.s32.totalorder %s43, 3
      %p214 = por %p212, %p213
      %p215 = scmp.ne.s32.totalorder %s204, %s205
      %p216 = scmp.eq.s32.totalorder %s43, 0
      %p217 = por %p215, %p216
      %p218 = scmp.ne.s32.totalorder %s204, %s205
      %p219 = scmp.eq.s32.totalorder %s44, 3
      %p220 = por %p218, %p219
      %p222 = scmp.ne.s32.totalorder %s205, %s221
      %p223 = scmp.eq.s32.totalorder %s44, 0
      %p224 = por %p222, %p223
      %s225 = ssub.s32 %s46, %s53
      %p226 = scmp.eq.s32.totalorder %s225, 0
      %s228 = sadd.s32 %s227, 1
      %s229 = scalar_select %p226, %s227, %s228
      %p232 = pneg %p226
      %p233 = scmp.eq.s32.totalorder %s38, 3
      %p234 = por %p232, %p233
      %p235 = scmp.ne.s32.totalorder %s227, %s230
      %p236 = scmp.eq.s32.totalorder %s38, 0
      %p237 = por %p235, %p236
      %p238 = scmp.ne.s32.totalorder %s227, %s230
      %p239 = scmp.eq.s32.totalorder %s43, 3
      %p240 = por %p238, %p239
      %p241 = scmp.ne.s32.totalorder %s230, %s231
      %p242 = scmp.eq.s32.totalorder %s43, 0
      %p243 = por %p241, %p242
      %p244 = scmp.ne.s32.totalorder %s230, %s231
      %p245 = scmp.eq.s32.totalorder %s44, 3
      %p246 = por %p244, %p245
      %p248 = scmp.ne.s32.totalorder %s231, %s247
      %p249 = scmp.eq.s32.totalorder %s44, 0
      %p250 = por %p248, %p249
      %s251 = ssub.s32 %s46, %s53
      %p252 = scmp.eq.s32.totalorder %s251, 0
      %s254 = sadd.s32 %s253, 1
      %s255 = scalar_select %p252, %s253, %s254
      %p258 = pneg %p252
      %p259 = scmp.eq.s32.totalorder %s38, 3
      %p260 = por %p258, %p259
      %p261 = scmp.ne.s32.totalorder %s253, %s256
      %p262 = scmp.eq.s32.totalorder %s38, 0
      %p263 = por %p261, %p262
      %p264 = scmp.ne.s32.totalorder %s253, %s256
      %p265 = scmp.eq.s32.totalorder %s43, 3
      %p266 = por %p264, %p265
      %p267 = scmp.ne.s32.totalorder %s256, %s257
      %p268 = scmp.eq.s32.totalorder %s43, 0
      %p269 = por %p267, %p268
      %p270 = scmp.ne.s32.totalorder %s256, %s257
      %p271 = scmp.eq.s32.totalorder %s44, 3
      %p272 = por %p270, %p271
      %p274 = scmp.ne.s32.totalorder %s257, %s273
      %p275 = scmp.eq.s32.totalorder %s44, 0
      %p276 = por %p274, %p275
      %s277 = ssub.s32 %s46, %s53
      %p278 = scmp.eq.s32.totalorder %s277, 0
      %s280 = sadd.s32 %s279, 1
      %s281 = scalar_select %p278, %s279, %s280
      %p284 = pneg %p278
      %p285 = scmp.eq.s32.totalorder %s38, 3
      %p286 = por %p284, %p285
      %p287 = scmp.ne.s32.totalorder %s279, %s282
      %p288 = scmp.eq.s32.totalorder %s38, 0
      %p289 = por %p287, %p288
      %p290 = scmp.ne.s32.totalorder %s279, %s282
      %p291 = scmp.eq.s32.totalorder %s43, 3
      %p292 = por %p290, %p291
      %p293 = scmp.ne.s32.totalorder %s282, %s283
      %p294 = scmp.eq.s32.totalorder %s43, 0
      %p295 = por %p293, %p294
      %p296 = scmp.ne.s32.totalorder %s282, %s283
      %p297 = scmp.eq.s32.totalorder %s44, 3
      %p298 = por %p296, %p297
      %p300 = scmp.ne.s32.totalorder %s283, %s299
      %p301 = scmp.eq.s32.totalorder %s44, 0
      %p302 = por %p300, %p301
      %s303 = ssub.s32 %s46, %s53
      %p304 = scmp.eq.s32.totalorder %s303, 0
      %s306 = sadd.s32 %s305, 1
      %s307 = scalar_select %p304, %s305, %s306
      %p310 = pneg %p304
      %p311 = scmp.eq.s32.totalorder %s38, 3
      %p312 = por %p310, %p311
      %p313 = scmp.ne.s32.totalorder %s305, %s308
      %p314 = scmp.eq.s32.totalorder %s38, 0
      %p315 = por %p313, %p314
      %p316 = scmp.ne.s32.totalorder %s305, %s308
      %p317 = scmp.eq.s32.totalorder %s43, 3
      %p318 = por %p316, %p317
      %p319 = scmp.ne.s32.totalorder %s308, %s309
      %p320 = scmp.eq.s32.totalorder %s43, 0
      %p321 = por %p319, %p320
      %p322 = scmp.ne.s32.totalorder %s308, %s309
      %p323 = scmp.eq.s32.totalorder %s44, 3
      %p324 = por %p322, %p323
      %p326 = scmp.ne.s32.totalorder %s309, %s325
      %p327 = scmp.eq.s32.totalorder %s44, 0
      %p328 = por %p326, %p327
      %s329 = ssub.s32 %s46, %s53
      %p330 = scmp.eq.s32.totalorder %s329, 0
      %s332 = sadd.s32 %s331, 1
      %s333 = scalar_select %p330, %s331, %s332
      %p336 = pneg %p330
      %p337 = scmp.eq.s32.totalorder %s38, 3
      %p338 = por %p336, %p337
      %p339 = scmp.ne.s32.totalorder %s331, %s334
      %p340 = scmp.eq.s32.totalorder %s38, 0
      %p341 = por %p339, %p340
      %p342 = scmp.ne.s32.totalorder %s331, %s334
      %p343 = scmp.eq.s32.totalorder %s43, 3
      %p344 = por %p342, %p343
      %p345 = scmp.ne.s32.totalorder %s334, %s335
      %p346 = scmp.eq.s32.totalorder %s43, 0
      %p347 = por %p345, %p346
      %p348 = scmp.ne.s32.totalorder %s334, %s335
      %p349 = scmp.eq.s32.totalorder %s44, 3
      %p350 = por %p348, %p349
      %p352 = scmp.ne.s32.totalorder %s335, %s351
      %p353 = scmp.eq.s32.totalorder %s44, 0
      %p354 = por %p352, %p353
      %s355 = ssub.s32 %s46, %s53
      %p356 = scmp.eq.s32.totalorder %s355, 0
      %s358 = sadd.s32 %s357, 1
      %s359 = scalar_select %p356, %s357, %s358
      %p362 = pneg %p356
      %p363 = scmp.eq.s32.totalorder %s38, 3
      %p364 = por %p362, %p363
      %p365 = scmp.ne.s32.totalorder %s357, %s360
      %p366 = scmp.eq.s32.totalorder %s38, 0
      %p367 = por %p365, %p366
      %p368 = scmp.ne.s32.totalorder %s357, %s360
      %p369 = scmp.eq.s32.totalorder %s43, 3
      %p370 = por %p368, %p369
      %p371 = scmp.ne.s32.totalorder %s360, %s361
      %p372 = scmp.eq.s32.totalorder %s43, 0
      %p373 = por %p371, %p372
      %p374 = scmp.ne.s32.totalorder %s360, %s361
      %p375 = scmp.eq.s32.totalorder %s44, 3
      %p376 = por %p374, %p375
      %p378 = scmp.ne.s32.totalorder %s361, %s377
      %p379 = scmp.eq.s32.totalorder %s44, 0
      %p380 = por %p378, %p379
      %s381 = ssub.s32 %s46, %s53
      %p382 = scmp.eq.s32.totalorder %s381, 0
      %s384 = sadd.s32 %s383, 1
      %s385 = scalar_select %p382, %s383, %s384
      %p388 = pneg %p382
      %p389 = scmp.eq.s32.totalorder %s38, 3
      %p390 = por %p388, %p389
      %p391 = scmp.ne.s32.totalorder %s383, %s386
      %p392 = scmp.eq.s32.totalorder %s38, 0
      %p393 = por %p391, %p392
      %p394 = scmp.ne.s32.totalorder %s383, %s386
      %p395 = scmp.eq.s32.totalorder %s43, 3
      %p396 = por %p394, %p395
      %p397 = scmp.ne.s32.totalorder %s386, %s387
      %p398 = scmp.eq.s32.totalorder %s43, 0
      %p399 = por %p397, %p398
      %p400 = scmp.ne.s32.totalorder %s386, %s387
      %p401 = scmp.eq.s32.totalorder %s44, 3
      %p402 = por %p400, %p401
      %p404 = scmp.ne.s32.totalorder %s387, %s403
      %p405 = scmp.eq.s32.totalorder %s44, 0
      %p406 = por %p404, %p405
      %s407 = ssub.s32 %s46, %s53
      %p408 = scmp.eq.s32.totalorder %s407, 0
      %s410 = sadd.s32 %s409, 1
      %s411 = scalar_select %p408, %s409, %s410
      %p414 = pneg %p408
      %p415 = scmp.eq.s32.totalorder %s38, 3
      %p416 = por %p414, %p415
      %p417 = scmp.ne.s32.totalorder %s409, %s412
      %p418 = scmp.eq.s32.totalorder %s38, 0
      %p419 = por %p417, %p418
      %p420 = scmp.ne.s32.totalorder %s409, %s412
      %p421 = scmp.eq.s32.totalorder %s43, 3
      %p422 = por %p420, %p421
      %p423 = scmp.ne.s32.totalorder %s412, %s413
      %p424 = scmp.eq.s32.totalorder %s43, 0
      %p425 = por %p423, %p424
      %p426 = scmp.ne.s32.totalorder %s412, %s413
      %p427 = scmp.eq.s32.totalorder %s44, 3
      %p428 = por %p426, %p427
      %p430 = scmp.ne.s32.totalorder %s413, %s429
      %p431 = scmp.eq.s32.totalorder %s44, 0
      %p432 = por %p430, %p431
      %s433 = ssub.s32 %s46, %s53
      %p434 = scmp.eq.s32.totalorder %s433, 0
      %s436 = sadd.s32 %s435, 1
      %s437 = scalar_select %p434, %s435, %s436
      %p440 = pneg %p434
      %p441 = scmp.eq.s32.totalorder %s38, 3
      %p442 = por %p440, %p441
      %p443 = scmp.ne.s32.totalorder %s435, %s438
      %p444 = scmp.eq.s32.totalorder %s38, 0
      %p445 = por %p443, %p444
      %p446 = scmp.ne.s32.totalorder %s435, %s438
      %p447 = scmp.eq.s32.totalorder %s43, 3
      %p448 = por %p446, %p447
      %p449 = scmp.ne.s32.totalorder %s438, %s439
      %p450 = scmp.eq.s32.totalorder %s43, 0
      %p451 = por %p449, %p450
      %p452 = scmp.ne.s32.totalorder %s438, %s439
      %p453 = scmp.eq.s32.totalorder %s44, 3
      %p454 = por %p452, %p453
      %p456 = scmp.ne.s32.totalorder %s439, %s455
      %p457 = scmp.eq.s32.totalorder %s44, 0
      %p458 = por %p456, %p457
      %s459 = ssub.s32 %s46, %s53
      %p460 = scmp.eq.s32.totalorder %s459, 0
      %s462 = sadd.s32 %s461, 1
      %s463 = scalar_select %p460, %s461, %s462
      %p466 = pneg %p460
      %p467 = scmp.eq.s32.totalorder %s38, 3
      %p468 = por %p466, %p467
      %p469 = scmp.ne.s32.totalorder %s461, %s464
      %p470 = scmp.eq.s32.totalorder %s38, 0
      %p471 = por %p469, %p470
      %p472 = scmp.ne.s32.totalorder %s461, %s464
      %p473 = scmp.eq.s32.totalorder %s43, 3
      %p474 = por %p472, %p473
      %p475 = scmp.ne.s32.totalorder %s464, %s465
      %p476 = scmp.eq.s32.totalorder %s43, 0
      %p477 = por %p475, %p476
      %p478 = scmp.ne.s32.totalorder %s464, %s465
      %p479 = scmp.eq.s32.totalorder %s44, 3
      %p480 = por %p478, %p479
      %p482 = scmp.ne.s32.totalorder %s465, %s481
      %p483 = scmp.eq.s32.totalorder %s44, 0
      %p484 = por %p482, %p483
      %s485 = ssub.s32 %s45, %s57
      %p486 = scmp.eq.s32.totalorder %s485, 0
      %s488 = sadd.s32 %s487, 1
      %s489 = scalar_select %p486, %s487, %s488
      %p492 = pneg %p486
      %p493 = scmp.eq.s32.totalorder %s38, 3
      %p494 = por %p492, %p493
      %p495 = scmp.ne.s32.totalorder %s487, %s490
      %p496 = scmp.eq.s32.totalorder %s38, 0
      %p497 = por %p495, %p496
      %p498 = scmp.ne.s32.totalorder %s487, %s490
      %p499 = scmp.eq.s32.totalorder %s43, 3
      %p500 = por %p498, %p499
      %p501 = scmp.ne.s32.totalorder %s490, %s491
      %p502 = scmp.eq.s32.totalorder %s43, 0
      %p503 = por %p501, %p502
      %p504 = scmp.ne.s32.totalorder %s490, %s491
      %p505 = scmp.eq.s32.totalorder %s44, 3
      %p506 = por %p504, %p505
      %p508 = scmp.ne.s32.totalorder %s491, %s507
      %p509 = scmp.eq.s32.totalorder %s44, 0
      %p510 = por %p508, %p509
      %p511 = scmp.le.s32.totalorder 1, %s38
      %p512 = scmp.lt.s32.totalorder %s38, 5
      %p513 = pnand %p511, %p512
      %p514 = pneg %p513
      // Predicated region
      $region9: #{transformer_encoder_pallas.1} parent=5 // pred_check
        _
      $region10: #{transformer_encoder_pallas.1} parent=5 // pred_check_branch
        %516 = sbr.rel (%p513) target = $region12
      $region11: #{transformer_encoder_pallas.1} parent=5 // pred_region
        %s517 = ssub.s32 %s38, 1
        // Predicated region
        $region13: #{transformer_encoder_pallas.1} parent=11 // pred_check
          %p518 = pneg %p97
        $region14: #{transformer_encoder_pallas.1} parent=11 // pred_check_branch
          %520 = sbr.rel (%p518) target = $region16
        $region15: #{transformer_encoder_pallas.1} parent=11 // pred_region
          _
        $region16: #{transformer_encoder_pallas.1} parent=11 // pred_fallthru
          _
        // Predicated region
        $region17: #{transformer_encoder_pallas.1} parent=11 // pred_check
          %p521 = pneg %p118
        $region18: #{transformer_encoder_pallas.1} parent=11 // pred_check_branch
          %523 = sbr.rel (%p521) target = $region20
        $region19: #{transformer_encoder_pallas.1} parent=11 // pred_region
          _
        $region20: #{transformer_encoder_pallas.1} parent=11 // pred_fallthru
          _
        // Predicated region
        $region21: #{transformer_encoder_pallas.1} parent=11 // pred_check
          %p524 = pneg %p139
        $region22: #{transformer_encoder_pallas.1} parent=11 // pred_check_branch
          %526 = sbr.rel (%p524) target = $region24
        $region23: #{transformer_encoder_pallas.1} parent=11 // pred_region
          _
        $region24: #{transformer_encoder_pallas.1} parent=11 // pred_fallthru
          _
      $region12: #{transformer_encoder_pallas.1} parent=5 // pred_fallthru
        _
      %p527 = scmp.lt.s32.totalorder %s38, 4
      // Predicated region
      $region25: #{transformer_encoder_pallas.1} parent=5 // pred_check
        %p528 = pneg %p527
      $region26: #{transformer_encoder_pallas.1} parent=5 // pred_check_branch
        %530 = sbr.rel (%p528) target = $region28
      $region27: #{transformer_encoder_pallas.1} parent=5 // pred_region
        // Predicated region
        $region29: #{transformer_encoder_pallas.1} parent=27 // pred_check
          %p531 = pneg %p70
        $region30: #{transformer_encoder_pallas.1} parent=27 // pred_check_branch
          %533 = sbr.rel (%p531) target = $region32
        $region31: #{transformer_encoder_pallas.1} parent=27 // pred_region
          %s534 = sand.u32 %s60, 1
          %s535 = scalar_lea.sflag [#allocation4], %s534
          %s536 = sand.u32 %s60, 1
          %s537 = smul.addr %s536, 16
          %s538 = scalar_lea.vmem [#allocation3], %s537
          %s540 = ssub.s32 256, 256
          %541 = vsyncadd %s535, %s540
          %s542 = smul.addr %s45, 2
          %s543 = smul.addr %s542, 128
          %s544 = scalar_lea.hbm %s0, %s543
          %s545 = sshll.u32 %s538, 4
          %s546 = int_to_ptr.vmem [resolvable:$true] %s545
          %551 = dma.hbm_to_vmem [thread:$0]  %s544, 256, %s546, %s535, 128, 128, 8
        $region32: #{transformer_encoder_pallas.1} parent=27 // pred_fallthru
          _
        // Predicated region
        $region33: #{transformer_encoder_pallas.1} parent=27 // pred_check
          %p552 = pneg %p159
        $region34: #{transformer_encoder_pallas.1} parent=27 // pred_check_branch
          %554 = sbr.rel (%p552) target = $region36
        $region35: #{transformer_encoder_pallas.1} parent=27 // pred_region
          %p555 = scmp.lt.s32.totalorder %s46, 1
          %s556 = scalar_select %p555, %s46, 1
          %s557 = scalar_lea.vmem %s4, %s556
        $region36: #{transformer_encoder_pallas.1} parent=27 // pred_fallthru
          _
        // Predicated region
        $region37: #{transformer_encoder_pallas.1} parent=27 // pred_check
          %p558 = pneg %p185
        $region38: #{transformer_encoder_pallas.1} parent=27 // pred_check_branch
          %560 = sbr.rel (%p558) target = $region40
        $region39: #{transformer_encoder_pallas.1} parent=27 // pred_region
          %p561 = scmp.lt.s32.totalorder %s46, 1
          %s562 = scalar_select %p561, %s46, 1
          %s563 = scalar_lea.vmem %s5, %s562
        $region40: #{transformer_encoder_pallas.1} parent=27 // pred_fallthru
          _
        // Predicated region
        $region41: #{transformer_encoder_pallas.1} parent=27 // pred_check
          %p564 = pneg %p211
        $region42: #{transformer_encoder_pallas.1} parent=27 // pred_check_branch
          %566 = sbr.rel (%p564) target = $region44
        $region43: #{transformer_encoder_pallas.1} parent=27 // pred_region
          %p567 = scmp.lt.s32.totalorder %s46, 1
          %s568 = scalar_select %p567, %s46, 1
          %s569 = smul.addr %s568, 8
          %s570 = smul.addr %s569, 4
          %s571 = scalar_lea.vmem %s6, %s570
        $region44: #{transformer_encoder_pallas.1} parent=27 // pred_fallthru
          _
        // Predicated region
        $region45: #{transformer_encoder_pallas.1} parent=27 // pred_check
          %p572 = pneg %p237
        $region46: #{transformer_encoder_pallas.1} parent=27 // pred_check_branch
          %574 = sbr.rel (%p572) target = $region48
        $region47: #{transformer_encoder_pallas.1} parent=27 // pred_region
          %p575 = scmp.lt.s32.totalorder %s46, 1
          %s576 = scalar_select %p575, %s46, 1
          %s577 = smul.addr %s576, 8
          %s578 = smul.addr %s577, 4
          %s579 = scalar_lea.vmem %s7, %s578
        $region48: #{transformer_encoder_pallas.1} parent=27 // pred_fallthru
          _
        // Predicated region
        $region49: #{transformer_encoder_pallas.1} parent=27 // pred_check
          %p580 = pneg %p263
        $region50: #{transformer_encoder_pallas.1} parent=27 // pred_check_branch
          %582 = sbr.rel (%p580) target = $region52
        $region51: #{transformer_encoder_pallas.1} parent=27 // pred_region
          %p583 = scmp.lt.s32.totalorder %s46, 1
          %s584 = scalar_select %p583, %s46, 1
          %s585 = smul.addr %s584, 8
          %s586 = smul.addr %s585, 4
          %s587 = scalar_lea.vmem %s8, %s586
        $region52: #{transformer_encoder_pallas.1} parent=27 // pred_fallthru
          _
        // Predicated region
        $region53: #{transformer_encoder_pallas.1} parent=27 // pred_check
          %p588 = pneg %p289
        $region54: #{transformer_encoder_pallas.1} parent=27 // pred_check_branch
          %590 = sbr.rel (%p588) target = $region56
        $region55: #{transformer_encoder_pallas.1} parent=27 // pred_region
          %s591 = sand.u32 %s38, 1
          %s592 = scalar_lea.sflag [#allocation7], %s591
          %s593 = sand.u32 %s279, 1
          %s594 = smul.addr %s593, 32
          %s595 = scalar_lea.vmem [#allocation6], %s594
          %s597 = ssub.s32 512, 512
          %598 = vsyncadd %s592, %s597
          %s599 = smul.addr %s46, 8
          %s600 = smul.addr %s599, 64
          %s601 = scalar_lea.hbm %s9, %s600
          %s602 = sshll.u32 %s595, 4
          %s603 = int_to_ptr.vmem [resolvable:$true] %s602
          %608 = dma.hbm_to_vmem [thread:$0]  %s601, 512, %s603, %s592, 64, 64, 4
        $region56: #{transformer_encoder_pallas.1} parent=27 // pred_fallthru
          _
        // Predicated region
        $region57: #{transformer_encoder_pallas.1} parent=27 // pred_check
          %p609 = pneg %p315
        $region58: #{transformer_encoder_pallas.1} parent=27 // pred_check_branch
          %611 = sbr.rel (%p609) target = $region60
        $region59: #{transformer_encoder_pallas.1} parent=27 // pred_region
          %p612 = scmp.lt.s32.totalorder %s46, 1
          %s613 = scalar_select %p612, %s46, 1
          %s614 = scalar_lea.vmem %s10, %s613
        $region60: #{transformer_encoder_pallas.1} parent=27 // pred_fallthru
          _
        // Predicated region
        $region61: #{transformer_encoder_pallas.1} parent=27 // pred_check
          %p615 = pneg %p341
        $region62: #{transformer_encoder_pallas.1} parent=27 // pred_check_branch
          %617 = sbr.rel (%p615) target = $region64
        $region63: #{transformer_encoder_pallas.1} parent=27 // pred_region
          %s618 = sand.u32 %s38, 1
          %s619 = scalar_lea.sflag [#allocation7], %s618
          %s620 = sand.u32 %s331, 1
          %s621 = scalar_lea.vmem [#allocation8], %s620
          %s623 = ssub.s32 16, 16
          %624 = vsyncadd %s619, %s623
          %s625 = smul.addr %s46, 16
          %s626 = scalar_lea.hbm %s11, %s625
          %s628 = sshll.u32 %s621, 4
          %s629 = int_to_ptr.vmem [resolvable:$true] %s628
          %631 = dma.hbm_to_vmem [thread:$0]  %s626, 16, %s629, %s619
        $region64: #{transformer_encoder_pallas.1} parent=27 // pred_fallthru
          _
        // Predicated region
        $region65: #{transformer_encoder_pallas.1} parent=27 // pred_check
          %p632 = pneg %p367
        $region66: #{transformer_encoder_pallas.1} parent=27 // pred_check_branch
          %634 = sbr.rel (%p632) target = $region68
        $region67: #{transformer_encoder_pallas.1} parent=27 // pred_region
          %s635 = sand.u32 %s38, 1
          %s636 = scalar_lea.sflag [#allocation10], %s635
          %s637 = sand.u32 %s357, 1
          %s638 = scalar_lea.vmem [#allocation9], %s637
          %s640 = ssub.s32 16, 16
          %641 = vsyncadd %s636, %s640
          %s642 = smul.addr %s46, 16
          %s643 = scalar_lea.hbm %s12, %s642
          %s645 = sshll.u32 %s638, 4
          %s646 = int_to_ptr.vmem [resolvable:$true] %s645
          %648 = dma.hbm_to_vmem [thread:$0]  %s643, 16, %s646, %s636
        $region68: #{transformer_encoder_pallas.1} parent=27 // pred_fallthru
          _
        // Predicated region
        $region69: #{transformer_encoder_pallas.1} parent=27 // pred_check
          %p649 = pneg %p393
        $region70: #{transformer_encoder_pallas.1} parent=27 // pred_check_branch
          %651 = sbr.rel (%p649) target = $region72
        $region71: #{transformer_encoder_pallas.1} parent=27 // pred_region
          %s652 = sand.u32 %s38, 1
          %s653 = scalar_lea.sflag [#allocation10], %s652
          %s654 = sand.u32 %s383, 1
          %s655 = smul.addr %s654, 32
          %s656 = scalar_lea.vmem [#allocation11], %s655
          %s658 = ssub.s32 512, 512
          %659 = vsyncadd %s653, %s658
          %s660 = smul.addr %s46, 8
          %s661 = smul.addr %s660, 64
          %s662 = scalar_lea.hbm %s13, %s661
          %s663 = sshll.u32 %s656, 4
          %s664 = int_to_ptr.vmem [resolvable:$true] %s663
          %669 = dma.hbm_to_vmem [thread:$0]  %s662, 512, %s664, %s653, 64, 64, 4
        $region72: #{transformer_encoder_pallas.1} parent=27 // pred_fallthru
          _
        // Predicated region
        $region73: #{transformer_encoder_pallas.1} parent=27 // pred_check
          %p670 = pneg %p419
        $region74: #{transformer_encoder_pallas.1} parent=27 // pred_check_branch
          %672 = sbr.rel (%p670) target = $region76
        $region75: #{transformer_encoder_pallas.1} parent=27 // pred_region
          %s673 = sand.u32 %s38, 1
          %s674 = scalar_lea.sflag [#allocation13], %s673
          %s675 = sand.u32 %s409, 1
          %s676 = scalar_lea.vmem [#allocation12], %s675
          %s678 = ssub.s32 16, 16
          %679 = vsyncadd %s674, %s678
          %s680 = smul.addr %s46, 16
          %s681 = scalar_lea.hbm %s14, %s680
          %s683 = sshll.u32 %s676, 4
          %s684 = int_to_ptr.vmem [resolvable:$true] %s683
          %686 = dma.hbm_to_vmem [thread:$0]  %s681, 16, %s684, %s674
        $region76: #{transformer_encoder_pallas.1} parent=27 // pred_fallthru
          _
        // Predicated region
        $region77: #{transformer_encoder_pallas.1} parent=27 // pred_check
          %p687 = pneg %p445
        $region78: #{transformer_encoder_pallas.1} parent=27 // pred_check_branch
          %689 = sbr.rel (%p687) target = $region80
        $region79: #{transformer_encoder_pallas.1} parent=27 // pred_region
          %p690 = scmp.lt.s32.totalorder %s46, 1
          %s691 = scalar_select %p690, %s46, 1
          %s692 = smul.addr %s691, 16
          %s693 = smul.addr %s692, 4
          %s694 = scalar_lea.vmem %s15, %s693
        $region80: #{transformer_encoder_pallas.1} parent=27 // pred_fallthru
          _
        // Predicated region
        $region81: #{transformer_encoder_pallas.1} parent=27 // pred_check
          %p695 = pneg %p471
        $region82: #{transformer_encoder_pallas.1} parent=27 // pred_check_branch
          %697 = sbr.rel (%p695) target = $region84
        $region83: #{transformer_encoder_pallas.1} parent=27 // pred_region
          %s698 = sand.u32 %s38, 1
          %s699 = scalar_lea.sflag [#allocation13], %s698
          %s700 = sand.u32 %s461, 1
          %s701 = scalar_lea.vmem [#allocation14], %s700
          %s703 = ssub.s32 16, 16
          %704 = vsyncadd %s699, %s703
          %s705 = smul.addr %s46, 16
          %s706 = scalar_lea.hbm %s16, %s705
          %s708 = sshll.u32 %s701, 4
          %s709 = int_to_ptr.vmem [resolvable:$true] %s708
          %711 = dma.hbm_to_vmem [thread:$0]  %s706, 16, %s709, %s699
        $region84: #{transformer_encoder_pallas.1} parent=27 // pred_fallthru
          _
      $region28: #{transformer_encoder_pallas.1} parent=5 // pred_fallthru
        _
      %p712 = scmp.le.s32.totalorder 1, %s38
      %p713 = scmp.lt.s32.totalorder %s38, 5
      %p714 = pnand %p712, %p713
      %p715 = pneg %p714
      // Predicated region
      $region85: #{transformer_encoder_pallas.1} parent=5 // pred_check
        _
      $region86: #{transformer_encoder_pallas.1} parent=5 // pred_check_branch
        %717 = sbr.rel (%p714) target = $region88
      $region87: #{transformer_encoder_pallas.1} parent=5 // pred_region
        %s718 = ssub.s32 %s38, 1
        %s719 = sand.u32 %s63, 1
        %s720 = scalar_lea.sflag [#allocation4], %s719
        %s721 = sand.u32 %s63, 1
        %s722 = smul.addr %s721, 16
        %s723 = scalar_lea.vmem [#allocation3], %s722
        // Predicated region
        $region89: #{transformer_encoder_pallas.1} parent=87 // pred_check
          %p724 = pneg %p76
        $region90: #{transformer_encoder_pallas.1} parent=87 // pred_check_branch
          %726 = sbr.rel (%p724) target = $region92
        $region91: #{transformer_encoder_pallas.1} parent=87 // pred_region
          %727 = dma.done %s720, 256
        $region92: #{transformer_encoder_pallas.1} parent=87 // pred_fallthru
          _
        %s728 = sand.u32 %s43, 1
        %s729 = scalar_lea.sflag [#allocation7], %s728
        %s730 = sand.u32 %s282, 1
        %s731 = smul.addr %s730, 32
        %s732 = scalar_lea.vmem [#allocation6], %s731
        // Predicated region
        $region93: #{transformer_encoder_pallas.1} parent=87 // pred_check
          %p733 = pneg %p295
        $region94: #{transformer_encoder_pallas.1} parent=87 // pred_check_branch
          %735 = sbr.rel (%p733) target = $region96
        $region95: #{transformer_encoder_pallas.1} parent=87 // pred_region
          %736 = dma.done %s729, 512
        $region96: #{transformer_encoder_pallas.1} parent=87 // pred_fallthru
          _
        %s737 = sand.u32 %s43, 1
        %s738 = scalar_lea.sflag [#allocation7], %s737
        %s739 = sand.u32 %s334, 1
        %s740 = scalar_lea.vmem [#allocation8], %s739
        // Predicated region
        $region97: #{transformer_encoder_pallas.1} parent=87 // pred_check
          %p741 = pneg %p347
        $region98: #{transformer_encoder_pallas.1} parent=87 // pred_check_branch
          %743 = sbr.rel (%p741) target = $region100
        $region99: #{transformer_encoder_pallas.1} parent=87 // pred_region
          %744 = dma.done %s738, 16
        $region100: #{transformer_encoder_pallas.1} parent=87 // pred_fallthru
          _
        %s745 = sand.u32 %s43, 1
        %s746 = scalar_lea.sflag [#allocation10], %s745
        %s747 = sand.u32 %s360, 1
        %s748 = scalar_lea.vmem [#allocation9], %s747
        // Predicated region
        $region101: #{transformer_encoder_pallas.1} parent=87 // pred_check
          %p749 = pneg %p373
        $region102: #{transformer_encoder_pallas.1} parent=87 // pred_check_branch
          %751 = sbr.rel (%p749) target = $region104
        $region103: #{transformer_encoder_pallas.1} parent=87 // pred_region
          %752 = dma.done %s746, 16
        $region104: #{transformer_encoder_pallas.1} parent=87 // pred_fallthru
          _
        %s753 = sand.u32 %s43, 1
        %s754 = scalar_lea.sflag [#allocation10], %s753
        %s755 = sand.u32 %s386, 1
        %s756 = smul.addr %s755, 32
        %s757 = scalar_lea.vmem [#allocation11], %s756
        // Predicated region
        $region105: #{transformer_encoder_pallas.1} parent=87 // pred_check
          %p758 = pneg %p399
        $region106: #{transformer_encoder_pallas.1} parent=87 // pred_check_branch
          %760 = sbr.rel (%p758) target = $region108
        $region107: #{transformer_encoder_pallas.1} parent=87 // pred_region
          %761 = dma.done %s754, 512
        $region108: #{transformer_encoder_pallas.1} parent=87 // pred_fallthru
          _
        %s762 = sand.u32 %s43, 1
        %s763 = scalar_lea.sflag [#allocation13], %s762
        %s764 = sand.u32 %s412, 1
        %s765 = scalar_lea.vmem [#allocation12], %s764
        // Predicated region
        $region109: #{transformer_encoder_pallas.1} parent=87 // pred_check
          %p766 = pneg %p425
        $region110: #{transformer_encoder_pallas.1} parent=87 // pred_check_branch
          %768 = sbr.rel (%p766) target = $region112
        $region111: #{transformer_encoder_pallas.1} parent=87 // pred_region
          %769 = dma.done %s763, 16
        $region112: #{transformer_encoder_pallas.1} parent=87 // pred_fallthru
          _
        %s770 = sand.u32 %s43, 1
        %s771 = scalar_lea.sflag [#allocation13], %s770
        %s772 = sand.u32 %s464, 1
        %s773 = scalar_lea.vmem [#allocation14], %s772
        // Predicated region
        $region113: #{transformer_encoder_pallas.1} parent=87 // pred_check
          %p774 = pneg %p477
        $region114: #{transformer_encoder_pallas.1} parent=87 // pred_check_branch
          %776 = sbr.rel (%p774) target = $region116
        $region115: #{transformer_encoder_pallas.1} parent=87 // pred_region
          %777 = dma.done %s771, 16
        $region116: #{transformer_encoder_pallas.1} parent=87 // pred_fallthru
          _
        %s778 = sand.u32 %s63, 1
        %s779 = scalar_lea.sflag [#allocation4], %s778
        %s780 = sand.u32 %s63, 1
        %s781 = smul.addr %s780, 16
        %s782 = scalar_lea.vmem [#allocation3], %s781
        %p783 = pneg %p76
        %p784 = pneg %p73
        %p785 = pneg %p97
        %p786 = pneg %p94
        %p787 = pneg %p118
        %p788 = pneg %p115
        %p789 = pneg %p139
        %p790 = pneg %p136
        %p791 = scmp.lt.s32.totalorder %s48, 1
        %s792 = scalar_select %p791, %s48, 1
        %s793 = scalar_lea.vmem %s4, %s792
        %p794 = pneg %p165
        %p795 = pneg %p162
        %p796 = scmp.lt.s32.totalorder %s48, 1
        %s797 = scalar_select %p796, %s48, 1
        %s798 = scalar_lea.vmem %s5, %s797
        %p799 = pneg %p191
        %p800 = pneg %p188
        %p801 = scmp.lt.s32.totalorder %s48, 1
        %s802 = scalar_select %p801, %s48, 1
        %s803 = smul.addr %s802, 8
        %s804 = smul.addr %s803, 4
        %s805 = scalar_lea.vmem %s6, %s804
        %p806 = pneg %p217
        %p807 = pneg %p214
        %p808 = scmp.lt.s32.totalorder %s48, 1
        %s809 = scalar_select %p808, %s48, 1
        %s810 = smul.addr %s809, 8
        %s811 = smul.addr %s810, 4
        %s812 = scalar_lea.vmem %s7, %s811
        %p813 = pneg %p243
        %p814 = pneg %p240
        %p815 = scmp.lt.s32.totalorder %s48, 1
        %s816 = scalar_select %p815, %s48, 1
        %s817 = smul.addr %s816, 8
        %s818 = smul.addr %s817, 4
        %s819 = scalar_lea.vmem %s8, %s818
        %p820 = pneg %p269
        %p821 = pneg %p266
        %s822 = sand.u32 %s43, 1
        %s823 = scalar_lea.sflag [#allocation7], %s822
        %s824 = sand.u32 %s282, 1
        %s825 = smul.addr %s824, 32
        %s826 = scalar_lea.vmem [#allocation6], %s825
        %p827 = pneg %p295
        %p828 = pneg %p292
        %p829 = scmp.lt.s32.totalorder %s48, 1
        %s830 = scalar_select %p829, %s48, 1
        %s831 = scalar_lea.vmem %s10, %s830
        %p832 = pneg %p321
        %p833 = pneg %p318
        %s834 = sand.u32 %s43, 1
        %s835 = scalar_lea.sflag [#allocation7], %s834
        %s836 = sand.u32 %s334, 1
        %s837 = scalar_lea.vmem [#allocation8], %s836
        %p838 = pneg %p347
        %p839 = pneg %p344
        %s840 = sand.u32 %s43, 1
        %s841 = scalar_lea.sflag [#allocation10], %s840
        %s842 = sand.u32 %s360, 1
        %s843 = scalar_lea.vmem [#allocation9], %s842
        %p844 = pneg %p373
        %p845 = pneg %p370
        %s846 = sand.u32 %s43, 1
        %s847 = scalar_lea.sflag [#allocation10], %s846
        %s848 = sand.u32 %s386, 1
        %s849 = smul.addr %s848, 32
        %s850 = scalar_lea.vmem [#allocation11], %s849
        %p851 = pneg %p399
        %p852 = pneg %p396
        %s853 = sand.u32 %s43, 1
        %s854 = scalar_lea.sflag [#allocation13], %s853
        %s855 = sand.u32 %s412, 1
        %s856 = scalar_lea.vmem [#allocation12], %s855
        %p857 = pneg %p425
        %p858 = pneg %p422
        %p859 = scmp.lt.s32.totalorder %s48, 1
        %s860 = scalar_select %p859, %s48, 1
        %s861 = smul.addr %s860, 16
        %s862 = smul.addr %s861, 4
        %s863 = scalar_lea.vmem %s15, %s862
        %p864 = pneg %p451
        %p865 = pneg %p448
        %s866 = sand.u32 %s43, 1
        %s867 = scalar_lea.sflag [#allocation13], %s866
        %s868 = sand.u32 %s464, 1
        %s869 = scalar_lea.vmem [#allocation14], %s868
        %p870 = pneg %p477
        %p871 = pneg %p474
        %p872 = pneg %p503
        %p873 = pneg %p500
        %s874 = sand.u32 %s490, 1
        %s875 = scalar_lea.sflag [#allocation5], %s874
        %s876 = sand.u32 %s490, 1
        %s877 = smul.addr %s876, 16
        %s878 = scalar_lea.vmem [#allocation15], %s877
        %p879 = scmp.lt.s32.totalorder %s48, 1
        %s880 = scalar_select %p879, %s48, 1
        %s881 = scalar_lea.vmem %s4, %s880
        %p882 = scmp.lt.s32.totalorder %s48, 1
        %s883 = scalar_select %p882, %s48, 1
        %s884 = scalar_lea.vmem %s5, %s883
        %p885 = scmp.lt.s32.totalorder %s48, 1
        %s886 = scalar_select %p885, %s48, 1
        %s887 = smul.addr %s886, 8
        %s888 = smul.addr %s887, 4
        %s889 = scalar_lea.vmem %s6, %s888
        %p890 = scmp.lt.s32.totalorder %s48, 1
        %s891 = scalar_select %p890, %s48, 1
        %s892 = smul.addr %s891, 8
        %s893 = smul.addr %s892, 4
        %s894 = scalar_lea.vmem %s7, %s893
        %p895 = scmp.lt.s32.totalorder %s48, 1
        %s896 = scalar_select %p895, %s48, 1
        %s897 = smul.addr %s896, 8
        %s898 = smul.addr %s897, 4
        %s899 = scalar_lea.vmem %s8, %s898
        %p900 = scmp.lt.s32.totalorder %s48, 1
        %s901 = scalar_select %p900, %s48, 1
        %s902 = scalar_lea.vmem %s10, %s901
        %p903 = scmp.lt.s32.totalorder %s48, 1
        %s904 = scalar_select %p903, %s48, 1
        %s905 = smul.addr %s904, 16
        %s906 = smul.addr %s905, 4
        %s907 = scalar_lea.vmem %s15, %s906
        %p909 = scmp.eq.s32.totalorder %s48, 0
        // Predicated region
        $region117: #{transformer_encoder_pallas.1} parent=87 // pred_check
          %p910 = pneg %p909
        $region118: #{transformer_encoder_pallas.1} parent=87 // pred_check_branch
          %912 = sbr.rel (%p910) target = $region120
        $region119: #{transformer_encoder_pallas.1} parent=87 // pred_region
          %v913 = vld [vmem:[%s723] sm:$0xff]
          %v914 = vld [vmem:[%s723 + $0x8] sm:$0xff]
          %vm915 = vcmask 523264
          %916 = vst.msk [vmem:[#allocation2] sm:$0xff] %vm915, %v913
          %917 = vst.msk [vmem:[#allocation2 + $0x8] sm:$0xff] %vm915, %v914
        $region120: #{transformer_encoder_pallas.1} parent=87 // pred_fallthru
          _
        %v918 = vld [vmem:[#allocation2] sm:$0xff]
        %v919 = vld [vmem:[#allocation2 + $0x8] sm:$0xff]
        %v920 = vld [vmem:[%s1] sm:$0xff]
        %v921 = vld [vmem:[%s1 + $0x8] sm:$0xff]
        %v922 = vadd.f32 %v918, %v920
        %v923 = vadd.f32 %v919, %v921
        %v924 = vld [vmem:[%s881] sm:$0x1]
        %v925 = vld [vmem:[%s884] sm:$0x1]
        %vm926 = vcmask 523264
        %v927 = vsel %vm926, %v922, 0.0
        %928 = vadd.xlane.f32.xlu0 %v927
        %v929 = vpop.xlane.xlu0 %928
        %v930 = vsel %vm926, %v923, 0.0
        %931 = vadd.xlane.f32.xlu0 %v930
        %v932 = vpop.xlane.xlu0 %931
        %v933 = vrcp.pop 64.0
        %v934 = vmul.f32 %v929, %v933
        %v935 = vmul.f32 %v932, %v933
        %v936 = vsub.f32 %v922, %v934
        %v937 = vsub.f32 %v923, %v935
        %v938 = vmul.f32 %v936, %v936
        %v939 = vmul.f32 %v937, %v937
        %v940 = vsel %vm926, %v938, 0.0
        %941 = vadd.xlane.f32.xlu0 %v940
        %v942 = vpop.xlane.xlu0 %941
        %v943 = vsel %vm926, %v939, 0.0
        %944 = vadd.xlane.f32.xlu0 %v943
        %v945 = vpop.xlane.xlu0 %944
        %v946 = vmul.f32 %v942, %v933
        %v947 = vmul.f32 %v945, %v933
        %v948 = vadd.f32 %v946, 1e-05
        %v949 = vadd.f32 %v947, 1e-05
        %v950 = vrsqrt.pop %v948
        %v951 = vrsqrt.pop %v949
        %v952 = vmul.f32 %v936, %v950
        %v953 = vmul.f32 %v937, %v951
        %v955 = vlaneseq
        %v956 = vshrl.u32 %v955, 7
        %v957 = vsub.s32 0, %v956
        %v958 = vrot.slane %v924, %v957
        %v960 = vmul.f32 %v952, %v958
        %v961 = vmul.f32 %v953, %v958
        %v963 = vlaneseq
        %v964 = vshrl.u32 %v963, 7
        %v965 = vsub.s32 0, %v964
        %v966 = vrot.slane %v925, %v965
        %v968 = vadd.f32 %v960, %v966
        %v969 = vadd.f32 %v961, %v966
        %v970 = vsel %vm926, %v918, 0.0
        %971 = vadd.xlane.f32.xlu0 %v970
        %v972 = vpop.xlane.xlu0 %971
        %v973 = vsel %vm926, %v919, 0.0
        %974 = vadd.xlane.f32.xlu0 %v973
        %v975 = vpop.xlane.xlu0 %974
        %v976 = vmul.f32 %v972, %v933
        %v977 = vmul.f32 %v975, %v933
        %v978 = vsub.f32 %v918, %v976
        %v979 = vsub.f32 %v919, %v977
        %v980 = vmul.f32 %v978, %v978
        %v981 = vmul.f32 %v979, %v979
        %v982 = vsel %vm926, %v980, 0.0
        %983 = vadd.xlane.f32.xlu0 %v982
        %v984 = vpop.xlane.xlu0 %983
        %v985 = vsel %vm926, %v981, 0.0
        %986 = vadd.xlane.f32.xlu0 %v985
        %v987 = vpop.xlane.xlu0 %986
        %v988 = vmul.f32 %v984, %v933
        %v989 = vmul.f32 %v987, %v933
        %v990 = vadd.f32 %v988, 1e-05
        %v991 = vadd.f32 %v989, 1e-05
        %v992 = vrsqrt.pop %v990
        %v993 = vrsqrt.pop %v991
        %v994 = vmul.f32 %v978, %v992
        %v995 = vmul.f32 %v979, %v993
        %v996 = vmul.f32 %v994, %v958
        %v997 = vmul.f32 %v995, %v958
        %v998 = vadd.f32 %v996, %v966
        %v999 = vadd.f32 %v997, %v966
        %v1000 = vpack.c.bf16 %v969, %v968
        %v1001 = vld [vmem:[%s889] sm:$0xf]
        %v1002 = vld [vmem:[%s889 + $0x4] sm:$0xf]
        %v1003 = vld [vmem:[%s889 + $0x8] sm:$0xf]
        %v1004 = vld [vmem:[%s889 + $0xc] sm:$0xf]
        %v1005 = vld [vmem:[%s889 + $0x10] sm:$0xf]
        %v1006 = vld [vmem:[%s889 + $0x14] sm:$0xf]
        %v1007 = vld [vmem:[%s889 + $0x18] sm:$0xf]
        %v1008 = vld [vmem:[%s889 + $0x1c] sm:$0xf]
        %v1017 = vunpack.c.l.b16 %v1001
        %v1018 = vunpack.c.l.b16 %v1002
        %v1019 = vunpack.c.l.b16 %v1003
        %v1020 = vunpack.c.l.b16 %v1004
        %v1021 = vunpack.c.l.b16 %v1005
        %v1022 = vunpack.c.l.b16 %v1006
        %v1023 = vunpack.c.l.b16 %v1007
        %v1024 = vunpack.c.l.b16 %v1008
        %v1025 = vpack.c.b16 %v1018, %v1017
        %v1026 = vpack.c.b16 %v1020, %v1019
        %v1027 = vpack.c.b16 %v1022, %v1021
        %v1028 = vpack.c.b16 %v1024, %v1023
        %v1034 = vsel %vm926, %v1000, 0
        %1036 = vmatprep.subr.bf16.mxu0 0
        %1037 = vmatpush1.bf16.msra.mxu0 %v1025
        %1038 = vmatprep.subr.bf16.mxu0 0
        %1039 = vmatpush1.bf16.msra.mxu0 %v1026
        %1040 = vmatprep.subr.bf16.mxu0 0
        %1041 = vmatpush1.bf16.msra.mxu0 %v1027
        %1042 = vmatprep.subr.bf16.mxu0 0
        %1043 = vmatpush1.bf16.msra.mxu0 %v1028
        %1044 = vmatprep.subr.bf16.mxu0 0
        %1045 = vmatpush1.bf16.msra.mxu0 0
        %1046 = vmatprep.subr.bf16.mxu0 0
        %1047 = vmatpush1.bf16.msra.mxu0 0
        %1048 = vmatprep.subr.bf16.mxu0 0
        %1049 = vmatpush1.bf16.msra.mxu0 0
        %1050 = vmatprep.subr.bf16.mxu0 0
        %1051 = vmatpush1.bf16.msra.mxu0 0
        %1052 = vmatprep.subr.bf16.mxu0 0
        %1053 = vmatpush1.bf16.msra.mxu0 0
        %1054 = vmatprep.subr.bf16.mxu0 0
        %1055 = vmatpush1.bf16.msra.mxu0 0
        %1056 = vmatprep.subr.bf16.mxu0 0
        %1057 = vmatpush1.bf16.msra.mxu0 0
        %1058 = vmatprep.subr.bf16.mxu0 0
        %1059 = vmatpush1.bf16.msra.mxu0 0
        %1060 = vmatprep.subr.bf16.mxu0 0
        %1061 = vmatpush1.bf16.msra.mxu0 0
        %1062 = vmatprep.subr.bf16.mxu0 0
        %1063 = vmatpush1.bf16.msra.mxu0 0
        %1064 = vmatprep.subr.bf16.mxu0 0
        %1065 = vmatpush1.bf16.msra.mxu0 0
        %1066 = vmatprep.subr.bf16.mxu0 0
        %1067 = vmatpush1.bf16.msra.mxu0 0
        %1068 = vmatprep.mubr.bf16.mxu0 0
        %1069 = vmatmul.mubr.bf16.gmra.mrb[0].mxu0 %v1034
        %v1070 = vpop.f32.mrb[0].mxu0
        %v1071 = vadd.f32 0.0, %v1070
        %v1072 = vpop.f32.mrb[0].mxu0
        %v1073 = vpop.f32.mrb[0].mxu0
        %v1074 = vadd.f32 0.0, %v1073
        %v1075 = vpop.f32.mrb[0].mxu0
        %1076 = vdwg.mxu0
        %v1077 = vld [vmem:[%s894] sm:$0xf]
        %v1078 = vld [vmem:[%s894 + $0x4] sm:$0xf]
        %v1079 = vld [vmem:[%s894 + $0x8] sm:$0xf]
        %v1080 = vld [vmem:[%s894 + $0xc] sm:$0xf]
        %v1081 = vld [vmem:[%s894 + $0x10] sm:$0xf]
        %v1082 = vld [vmem:[%s894 + $0x14] sm:$0xf]
        %v1083 = vld [vmem:[%s894 + $0x18] sm:$0xf]
        %v1084 = vld [vmem:[%s894 + $0x1c] sm:$0xf]
        %v1093 = vunpack.c.l.b16 %v1077
        %v1094 = vunpack.c.l.b16 %v1078
        %v1095 = vunpack.c.l.b16 %v1079
        %v1096 = vunpack.c.l.b16 %v1080
        %v1097 = vunpack.c.l.b16 %v1081
        %v1098 = vunpack.c.l.b16 %v1082
        %v1099 = vunpack.c.l.b16 %v1083
        %v1100 = vunpack.c.l.b16 %v1084
        %v1101 = vpack.c.b16 %v1094, %v1093
        %v1102 = vpack.c.b16 %v1096, %v1095
        %v1103 = vpack.c.b16 %v1098, %v1097
        %v1104 = vpack.c.b16 %v1100, %v1099
        %1109 = vmatprep.subr.bf16.mxu0 0
        %1110 = vmatpush1.bf16.msra.mxu0 %v1101
        %1111 = vmatprep.subr.bf16.mxu0 0
        %1112 = vmatpush1.bf16.msra.mxu0 %v1102
        %1113 = vmatprep.subr.bf16.mxu0 0
        %1114 = vmatpush1.bf16.msra.mxu0 %v1103
        %1115 = vmatprep.subr.bf16.mxu0 0
        %1116 = vmatpush1.bf16.msra.mxu0 %v1104
        %1117 = vmatprep.subr.bf16.mxu0 0
        %1118 = vmatpush1.bf16.msra.mxu0 0
        %1119 = vmatprep.subr.bf16.mxu0 0
        %1120 = vmatpush1.bf16.msra.mxu0 0
        %1121 = vmatprep.subr.bf16.mxu0 0
        %1122 = vmatpush1.bf16.msra.mxu0 0
        %1123 = vmatprep.subr.bf16.mxu0 0
        %1124 = vmatpush1.bf16.msra.mxu0 0
        %1125 = vmatprep.subr.bf16.mxu0 0
        %1126 = vmatpush1.bf16.msra.mxu0 0
        %1127 = vmatprep.subr.bf16.mxu0 0
        %1128 = vmatpush1.bf16.msra.mxu0 0
        %1129 = vmatprep.subr.bf16.mxu0 0
        %1130 = vmatpush1.bf16.msra.mxu0 0
        %1131 = vmatprep.subr.bf16.mxu0 0
        %1132 = vmatpush1.bf16.msra.mxu0 0
        %1133 = vmatprep.subr.bf16.mxu0 0
        %1134 = vmatpush1.bf16.msra.mxu0 0
        %1135 = vmatprep.subr.bf16.mxu0 0
        %1136 = vmatpush1.bf16.msra.mxu0 0
        %1137 = vmatprep.subr.bf16.mxu0 0
        %1138 = vmatpush1.bf16.msra.mxu0 0
        %1139 = vmatprep.subr.bf16.mxu0 0
        %1140 = vmatpush1.bf16.msra.mxu0 0
        %1141 = vmatprep.mubr.bf16.mxu0 0
        %1142 = vmatmul.mubr.bf16.gmra.mrb[0].mxu0 %v1034
        %v1143 = vpop.f32.mrb[0].mxu0
        %v1144 = vadd.f32 0.0, %v1143
        %v1145 = vpop.f32.mrb[0].mxu0
        %v1146 = vpop.f32.mrb[0].mxu0
        %v1147 = vadd.f32 0.0, %v1146
        %v1148 = vpop.f32.mrb[0].mxu0
        %1149 = vdwg.mxu0
        %v1150 = vpack.c.bf16 %v999, %v998
        %v1151 = vld [vmem:[%s899] sm:$0xf]
        %v1152 = vld [vmem:[%s899 + $0x4] sm:$0xf]
        %v1153 = vld [vmem:[%s899 + $0x8] sm:$0xf]
        %v1154 = vld [vmem:[%s899 + $0xc] sm:$0xf]
        %v1155 = vld [vmem:[%s899 + $0x10] sm:$0xf]
        %v1156 = vld [vmem:[%s899 + $0x14] sm:$0xf]
        %v1157 = vld [vmem:[%s899 + $0x18] sm:$0xf]
        %v1158 = vld [vmem:[%s899 + $0x1c] sm:$0xf]
        %v1167 = vunpack.c.l.b16 %v1151
        %v1168 = vunpack.c.l.b16 %v1152
        %v1169 = vunpack.c.l.b16 %v1153
        %v1170 = vunpack.c.l.b16 %v1154
        %v1171 = vunpack.c.l.b16 %v1155
        %v1172 = vunpack.c.l.b16 %v1156
        %v1173 = vunpack.c.l.b16 %v1157
        %v1174 = vunpack.c.l.b16 %v1158
        %v1175 = vpack.c.b16 %v1168, %v1167
        %v1176 = vpack.c.b16 %v1170, %v1169
        %v1177 = vpack.c.b16 %v1172, %v1171
        %v1178 = vpack.c.b16 %v1174, %v1173
        %v1184 = vsel %vm926, %v1150, 0
        %1186 = vmatprep.subr.bf16.mxu0 0
        %1187 = vmatpush1.bf16.msra.mxu0 %v1175
        %1188 = vmatprep.subr.bf16.mxu0 0
        %1189 = vmatpush1.bf16.msra.mxu0 %v1176
        %1190 = vmatprep.subr.bf16.mxu0 0
        %1191 = vmatpush1.bf16.msra.mxu0 %v1177
        %1192 = vmatprep.subr.bf16.mxu0 0
        %1193 = vmatpush1.bf16.msra.mxu0 %v1178
        %1194 = vmatprep.subr.bf16.mxu0 0
        %1195 = vmatpush1.bf16.msra.mxu0 0
        %1196 = vmatprep.subr.bf16.mxu0 0
        %1197 = vmatpush1.bf16.msra.mxu0 0
        %1198 = vmatprep.subr.bf16.mxu0 0
        %1199 = vmatpush1.bf16.msra.mxu0 0
        %1200 = vmatprep.subr.bf16.mxu0 0
        %1201 = vmatpush1.bf16.msra.mxu0 0
        %1202 = vmatprep.subr.bf16.mxu0 0
        %1203 = vmatpush1.bf16.msra.mxu0 0
        %1204 = vmatprep.subr.bf16.mxu0 0
        %1205 = vmatpush1.bf16.msra.mxu0 0
        %1206 = vmatprep.subr.bf16.mxu0 0
        %1207 = vmatpush1.bf16.msra.mxu0 0
        %1208 = vmatprep.subr.bf16.mxu0 0
        %1209 = vmatpush1.bf16.msra.mxu0 0
        %1210 = vmatprep.subr.bf16.mxu0 0
        %1211 = vmatpush1.bf16.msra.mxu0 0
        %1212 = vmatprep.subr.bf16.mxu0 0
        %1213 = vmatpush1.bf16.msra.mxu0 0
        %1214 = vmatprep.subr.bf16.mxu0 0
        %1215 = vmatpush1.bf16.msra.mxu0 0
        %1216 = vmatprep.subr.bf16.mxu0 0
        %1217 = vmatpush1.bf16.msra.mxu0 0
        %1218 = vmatprep.mubr.bf16.mxu0 0
        %1219 = vmatmul.mubr.bf16.gmra.mrb[0].mxu0 %v1184
        %v1220 = vpop.f32.mrb[0].mxu0
        %v1221 = vadd.f32 0.0, %v1220
        %v1222 = vpop.f32.mrb[0].mxu0
        %v1223 = vpop.f32.mrb[0].mxu0
        %v1224 = vadd.f32 0.0, %v1223
        %v1225 = vpop.f32.mrb[0].mxu0
        %1226 = vdwg.mxu0
        %v1227 = vpack.c.bf16 %v1074, %v1071
        %v1228 = vld [vmem:[%s2] sm:$0xff]
        %v1229 = vld [vmem:[%s2 + $0x8] sm:$0xff]
        %v1230 = vld [vmem:[%s2 + $0x10] sm:$0xff]
        %v1231 = vld [vmem:[%s2 + $0x18] sm:$0xff]
        %v1232 = vld [vmem:[%s2 + $0x20] sm:$0xff]
        %v1233 = vld [vmem:[%s2 + $0x28] sm:$0xff]
        %v1234 = vld [vmem:[%s2 + $0x30] sm:$0xff]
        %v1235 = vld [vmem:[%s2 + $0x38] sm:$0xff]
        %v1236 = vld [vmem:[%s2 + $0x40] sm:$0xff]
        %v1237 = vld [vmem:[%s2 + $0x48] sm:$0xff]
        %v1238 = vld [vmem:[%s2 + $0x50] sm:$0xff]
        %v1239 = vld [vmem:[%s2 + $0x58] sm:$0xff]
        %v1240 = vld [vmem:[%s2 + $0x60] sm:$0xff]
        %v1241 = vld [vmem:[%s2 + $0x68] sm:$0xff]
        %v1242 = vld [vmem:[%s2 + $0x70] sm:$0xff]
        %v1243 = vld [vmem:[%s2 + $0x78] sm:$0xff]
        %v1244 = vmul.f32 %v1144, %v1228
        %v1245 = vmul.f32 %v1147, %v1229
        %v1246 = vmul.f32 %v1144, %v1230
        %v1247 = vmul.f32 %v1147, %v1231
        %v1248 = vmul.f32 %v1144, %v1232
        %v1249 = vmul.f32 %v1147, %v1233
        %v1250 = vmul.f32 %v1144, %v1234
        %v1251 = vmul.f32 %v1147, %v1235
        %v1252 = vmul.f32 %v1144, %v1236
        %v1253 = vmul.f32 %v1147, %v1237
        %v1254 = vmul.f32 %v1144, %v1238
        %v1255 = vmul.f32 %v1147, %v1239
        %v1256 = vmul.f32 %v1144, %v1240
        %v1257 = vmul.f32 %v1147, %v1241
        %v1258 = vmul.f32 %v1144, %v1242
        %v1259 = vmul.f32 %v1147, %v1243
        %v1260 = vpack.c.bf16 %v1245, %v1244
        %v1261 = vpack.c.bf16 %v1247, %v1246
        %v1262 = vpack.c.bf16 %v1249, %v1248
        %v1263 = vpack.c.bf16 %v1251, %v1250
        %v1264 = vpack.c.bf16 %v1253, %v1252
        %v1265 = vpack.c.bf16 %v1255, %v1254
        %v1266 = vpack.c.bf16 %v1257, %v1256
        %v1267 = vpack.c.bf16 %v1259, %v1258
        %v1268 = vmul.f32 %v1221, %v1228
        %v1269 = vmul.f32 %v1224, %v1229
        %v1270 = vmul.f32 %v1221, %v1230
        %v1271 = vmul.f32 %v1224, %v1231
        %v1272 = vmul.f32 %v1221, %v1232
        %v1273 = vmul.f32 %v1224, %v1233
        %v1274 = vmul.f32 %v1221, %v1234
        %v1275 = vmul.f32 %v1224, %v1235
        %v1276 = vmul.f32 %v1221, %v1236
        %v1277 = vmul.f32 %v1224, %v1237
        %v1278 = vmul.f32 %v1221, %v1238
        %v1279 = vmul.f32 %v1224, %v1239
        %v1280 = vmul.f32 %v1221, %v1240
        %v1281 = vmul.f32 %v1224, %v1241
        %v1282 = vmul.f32 %v1221, %v1242
        %v1283 = vmul.f32 %v1224, %v1243
        %v1284 = vpack.c.bf16 %v1269, %v1268
        %v1285 = vpack.c.bf16 %v1271, %v1270
        %v1286 = vpack.c.bf16 %v1273, %v1272
        %v1287 = vpack.c.bf16 %v1275, %v1274
        %v1288 = vpack.c.bf16 %v1277, %v1276
        %v1289 = vpack.c.bf16 %v1279, %v1278
        %v1290 = vpack.c.bf16 %v1281, %v1280
        %v1291 = vpack.c.bf16 %v1283, %v1282
        %v1293 = vsel %vm926, %v1227, 0
        %v1296 = vsel %vm926, %v1260, 0
        %v1299 = vsel %vm926, %v1261, 0
        %v1302 = vsel %vm926, %v1262, 0
        %v1305 = vsel %vm926, %v1263, 0
        %v1308 = vsel %vm926, %v1264, 0
        %v1311 = vsel %vm926, %v1265, 0
        %v1314 = vsel %vm926, %v1266, 0
        %v1317 = vsel %vm926, %v1267, 0
        %1319 = vmatprep.subr.bf16.mxu0 0
        %1320 = vmatpush1.bf16.xpose.msra.mxu0 %v1296
        %1321 = vmatprep.subr.bf16.mxu0 0
        %1322 = vmatpush1.bf16.xpose.msra.mxu0 %v1299
        %1323 = vmatprep.subr.bf16.mxu0 0
        %1324 = vmatpush1.bf16.xpose.msra.mxu0 %v1302
        %1325 = vmatprep.subr.bf16.mxu0 0
        %1326 = vmatpush1.bf16.xpose.msra.mxu0 %v1305
        %1327 = vmatprep.subr.bf16.mxu0 0
        %1328 = vmatpush1.bf16.xpose.msra.mxu0 %v1308
        %1329 = vmatprep.subr.bf16.mxu0 0
        %1330 = vmatpush1.bf16.xpose.msra.mxu0 %v1311
        %1331 = vmatprep.subr.bf16.mxu0 0
        %1332 = vmatpush1.bf16.xpose.msra.mxu0 %v1314
        %1333 = vmatprep.subr.bf16.mxu0 0
        %1334 = vmatpush1.bf16.xpose.msra.mxu0 %v1317
        %1335 = vmatprep.subr.bf16.mxu0 0
        %1336 = vmatpush1.bf16.xpose.msra.mxu0 0
        %1337 = vmatprep.subr.bf16.mxu0 0
        %1338 = vmatpush1.bf16.xpose.msra.mxu0 0
        %1339 = vmatprep.subr.bf16.mxu0 0
        %1340 = vmatpush1.bf16.xpose.msra.mxu0 0
        %1341 = vmatprep.subr.bf16.mxu0 0
        %1342 = vmatpush1.bf16.xpose.msra.mxu0 0
        %1343 = vmatprep.subr.bf16.mxu0 0
        %1344 = vmatpush1.bf16.xpose.msra.mxu0 0
        %1345 = vmatprep.subr.bf16.mxu0 0
        %1346 = vmatpush1.bf16.xpose.msra.mxu0 0
        %1347 = vmatprep.subr.bf16.mxu0 0
        %1348 = vmatpush1.bf16.xpose.msra.mxu0 0
        %1349 = vmatprep.subr.bf16.mxu0 0
        %1350 = vmatpush1.bf16.xpose.msra.mxu0 0
        %1351 = vmatprep.mubr.bf16.mxu0 0
        %1352 = vmatmul.mubr.bf16.gmra.mrb[0].mxu0 %v1293
        %v1353 = vpop.f32.mrb[0].mxu0
        %v1354 = vadd.f32 0.0, %v1353
        %v1355 = vpop.f32.mrb[0].mxu0
        %v1356 = vpop.f32.mrb[0].mxu0
        %v1357 = vadd.f32 0.0, %v1356
        %v1358 = vpop.f32.mrb[0].mxu0
        %1359 = vdwg.mxu0
        %1360 = vmax.xlane.f32.xlu0 %v1354
        %v1361 = vpop.xlane.xlu0 %1360
        %1362 = vmax.xlane.f32.xlu0 %v1357
        %v1363 = vpop.xlane.xlu0 %1362
        %v1364 = vsub.f32 %v1354, %v1361
        %v1365 = vsub.f32 %v1357, %v1363
        %v1366 = vmul.f32 %v1364, 1.442695
        %v1367 = vpow.pop %v1366
        %v1368 = vmul.f32 %v1365, 1.442695
        %v1369 = vpow.pop %v1368
        %v1370 = vld [vmem:[%s3] sm:$0xff]
        %v1371 = vld [vmem:[%s3 + $0x8] sm:$0xff]
        %v1372 = vld [vmem:[%s3 + $0x10] sm:$0xff]
        %v1373 = vld [vmem:[%s3 + $0x18] sm:$0xff]
        %v1374 = vld [vmem:[%s3 + $0x20] sm:$0xff]
        %v1375 = vld [vmem:[%s3 + $0x28] sm:$0xff]
        %v1376 = vld [vmem:[%s3 + $0x30] sm:$0xff]
        %v1377 = vld [vmem:[%s3 + $0x38] sm:$0xff]
        %v1378 = vld [vmem:[%s3 + $0x40] sm:$0xff]
        %v1379 = vld [vmem:[%s3 + $0x48] sm:$0xff]
        %v1380 = vld [vmem:[%s3 + $0x50] sm:$0xff]
        %v1381 = vld [vmem:[%s3 + $0x58] sm:$0xff]
        %v1382 = vld [vmem:[%s3 + $0x60] sm:$0xff]
        %v1383 = vld [vmem:[%s3 + $0x68] sm:$0xff]
        %v1384 = vld [vmem:[%s3 + $0x70] sm:$0xff]
        %v1385 = vld [vmem:[%s3 + $0x78] sm:$0xff]
        %1386 = vmatprep.subr.mxu0 0.0
        %1387 = vmatpush1.msra.mxu0 %v1370
        %1388 = vmatprep.subr.mxu0 0.0
        %1389 = vmatpush1.msra.mxu0 %v1371
        %1390 = vmatprep.subr.mxu0 0.0
        %1391 = vmatpush1.msra.mxu0 %v1372
        %1392 = vmatprep.subr.mxu0 0.0
        %1393 = vmatpush1.msra.mxu0 %v1373
        %1394 = vmatprep.subr.mxu0 0.0
        %1395 = vmatpush1.msra.mxu0 %v1374
        %1396 = vmatprep.subr.mxu0 0.0
        %1397 = vmatpush1.msra.mxu0 %v1375
        %1398 = vmatprep.subr.mxu0 0.0
        %1399 = vmatpush1.msra.mxu0 %v1376
        %1400 = vmatprep.subr.mxu0 0.0
        %1401 = vmatpush1.msra.mxu0 %v1377
        %1402 = vmatprep.subr.mxu0 0.0
        %1403 = vmatpush1.msra.mxu0 %v1378
        %1404 = vmatprep.subr.mxu0 0.0
        %1405 = vmatpush1.msra.mxu0 %v1379
        %1406 = vmatprep.subr.mxu0 0.0
        %1407 = vmatpush1.msra.mxu0 %v1380
        %1408 = vmatprep.subr.mxu0 0.0
        %1409 = vmatpush1.msra.mxu0 %v1381
        %1410 = vmatprep.subr.mxu0 0.0
        %1411 = vmatpush1.msra.mxu0 %v1382
        %1412 = vmatprep.subr.mxu0 0.0
        %1413 = vmatpush1.msra.mxu0 %v1383
        %1414 = vmatprep.subr.mxu0 0.0
        %1415 = vmatpush1.msra.mxu0 %v1384
        %1416 = vmatprep.subr.mxu0 0.0
        %1417 = vmatpush1.msra.mxu0 %v1385
        %1418 = vmatprep.subr.mxu0 0.0
        %1419 = vmatpush1.msra.mxu0 0.0
        %1420 = vmatprep.subr.mxu0 0.0
        %1421 = vmatpush1.msra.mxu0 0.0
        %1422 = vmatprep.subr.mxu0 0.0
        %1423 = vmatpush1.msra.mxu0 0.0
        %1424 = vmatprep.subr.mxu0 0.0
        %1425 = vmatpush1.msra.mxu0 0.0
        %1426 = vmatprep.subr.mxu0 0.0
        %1427 = vmatpush1.msra.mxu0 0.0
        %1428 = vmatprep.subr.mxu0 0.0
        %1429 = vmatpush1.msra.mxu0 0.0
        %1430 = vmatprep.subr.mxu0 0.0
        %1431 = vmatpush1.msra.mxu0 0.0
        %1432 = vmatprep.subr.mxu0 0.0
        %1433 = vmatpush1.msra.mxu0 0.0
        %1434 = vmatprep.subr.mxu0 0.0
        %1435 = vmatpush1.msra.mxu0 0.0
        %1436 = vmatprep.subr.mxu0 0.0
        %1437 = vmatpush1.msra.mxu0 0.0
        %1438 = vmatprep.subr.mxu0 0.0
        %1439 = vmatpush1.msra.mxu0 0.0
        %1440 = vmatprep.subr.mxu0 0.0
        %1441 = vmatpush1.msra.mxu0 0.0
        %1442 = vmatprep.subr.mxu0 0.0
        %1443 = vmatpush1.msra.mxu0 0.0
        %1444 = vmatprep.subr.mxu0 0.0
        %1445 = vmatpush1.msra.mxu0 0.0
        %1446 = vmatprep.subr.mxu0 0.0
        %1447 = vmatpush1.msra.mxu0 0.0
        %1448 = vmatprep.subr.mxu0 0.0
        %1449 = vmatpush1.msra.mxu0 0.0
        %1450 = vmatprep.mubr.f32.mxu0 0.0
        %1451 = vmatmul.mubr.f32.gmra.mrb[0].mxu0 %v1367
        %v1452 = vpop.f32.mrb[0].mxu0
        %v1453 = vadd.f32 0.0, %v1452
        %v1454 = vpop.f32.mrb[0].mxu0
        %1455 = vmatprep.mubr.f32.mxu0 0.0
        %1456 = vmatmul.mubr.f32.gmra.mrb[0].mxu0 %v1369
        %v1457 = vpop.f32.mrb[0].mxu0
        %v1458 = vadd.f32 0.0, %v1457
        %v1459 = vpop.f32.mrb[0].mxu0
        %1460 = vdwg.mxu0
        %v1461 = vrcp.pop %v1453
        %v1462 = vrcp.pop %v1458
        %v1463 = vmul.f32 %v1367, %v1461
        %v1464 = vmul.f32 %v1369, %v1462
        %v1465 = vpack.c.bf16 %v1464, %v1463
        %1466 = vmatprep.subr.bf16.mxu0 0
        %1467 = vmatpush1.bf16.msra.mxu0 %v1284
        %1468 = vmatprep.subr.bf16.mxu0 0
        %1469 = vmatpush1.bf16.msra.mxu0 %v1285
        %1470 = vmatprep.subr.bf16.mxu0 0
        %1471 = vmatpush1.bf16.msra.mxu0 %v1286
        %1472 = vmatprep.subr.bf16.mxu0 0
        %1473 = vmatpush1.bf16.msra.mxu0 %v1287
        %1474 = vmatprep.subr.bf16.mxu0 0
        %1475 = vmatpush1.bf16.msra.mxu0 %v1288
        %1476 = vmatprep.subr.bf16.mxu0 0
        %1477 = vmatpush1.bf16.msra.mxu0 %v1289
        %1478 = vmatprep.subr.bf16.mxu0 0
        %1479 = vmatpush1.bf16.msra.mxu0 %v1290
        %1480 = vmatprep.subr.bf16.mxu0 0
        %1481 = vmatpush1.bf16.msra.mxu0 %v1291
        %1482 = vmatprep.subr.bf16.mxu0 0
        %1483 = vmatpush1.bf16.msra.mxu0 0
        %1484 = vmatprep.subr.bf16.mxu0 0
        %1485 = vmatpush1.bf16.msra.mxu0 0
        %1486 = vmatprep.subr.bf16.mxu0 0
        %1487 = vmatpush1.bf16.msra.mxu0 0
        %1488 = vmatprep.subr.bf16.mxu0 0
        %1489 = vmatpush1.bf16.msra.mxu0 0
        %1490 = vmatprep.subr.bf16.mxu0 0
        %1491 = vmatpush1.bf16.msra.mxu0 0
        %1492 = vmatprep.subr.bf16.mxu0 0
        %1493 = vmatpush1.bf16.msra.mxu0 0
        %1494 = vmatprep.subr.bf16.mxu0 0
        %1495 = vmatpush1.bf16.msra.mxu0 0
        %1496 = vmatprep.subr.bf16.mxu0 0
        %1497 = vmatpush1.bf16.msra.mxu0 0
        %1498 = vmatprep.mubr.bf16.mxu0 0
        %1499 = vmatmul.mubr.bf16.gmra.mrb[0].mxu0 %v1465
        %v1500 = vpop.f32.mrb[0].mxu0
        %v1501 = vadd.f32 0.0, %v1500
        %v1502 = vpop.f32.mrb[0].mxu0
        %v1503 = vpop.f32.mrb[0].mxu0
        %v1504 = vadd.f32 0.0, %v1503
        %v1505 = vpop.f32.mrb[0].mxu0
        %1506 = vdwg.mxu0
        %v1507 = vpack.c.bf16 %v1504, %v1501
        %v1508 = vld [vmem:[%s732] sm:$0xf]
        %v1509 = vld [vmem:[%s732 + $0x4] sm:$0xf]
        %v1510 = vld [vmem:[%s732 + $0x8] sm:$0xf]
        %v1511 = vld [vmem:[%s732 + $0xc] sm:$0xf]
        %v1512 = vld [vmem:[%s732 + $0x10] sm:$0xf]
        %v1513 = vld [vmem:[%s732 + $0x14] sm:$0xf]
        %v1514 = vld [vmem:[%s732 + $0x18] sm:$0xf]
        %v1515 = vld [vmem:[%s732 + $0x1c] sm:$0xf]
        %v1516 = vld [vmem:[%s902] sm:$0x1]
        %v1518 = vlaneseq
        %v1519 = vshrl.u32 %v1518, 7
        %v1520 = vsub.s32 0, %v1519
        %v1521 = vrot.slane %v1516, %v1520
        %v1531 = vunpack.c.l.b16 %v1508
        %v1532 = vunpack.c.l.b16 %v1509
        %v1533 = vunpack.c.l.b16 %v1510
        %v1534 = vunpack.c.l.b16 %v1511
        %v1535 = vunpack.c.l.b16 %v1512
        %v1536 = vunpack.c.l.b16 %v1513
        %v1537 = vunpack.c.l.b16 %v1514
        %v1538 = vunpack.c.l.b16 %v1515
        %v1539 = vpack.c.b16 %v1532, %v1531
        %v1540 = vpack.c.b16 %v1534, %v1533
        %v1541 = vpack.c.b16 %v1536, %v1535
        %v1542 = vpack.c.b16 %v1538, %v1537
        %v1548 = vsel %vm926, %v1507, 0
        %1550 = vmatprep.subr.bf16.mxu0 0
        %1551 = vmatpush1.bf16.msra.mxu0 %v1539
        %1552 = vmatprep.subr.bf16.mxu0 0
        %1553 = vmatpush1.bf16.msra.mxu0 %v1540
        %1554 = vmatprep.subr.bf16.mxu0 0
        %1555 = vmatpush1.bf16.msra.mxu0 %v1541
        %1556 = vmatprep.subr.bf16.mxu0 0
        %1557 = vmatpush1.bf16.msra.mxu0 %v1542
        %1558 = vmatprep.subr.bf16.mxu0 0
        %1559 = vmatpush1.bf16.msra.mxu0 0
        %1560 = vmatprep.subr.bf16.mxu0 0
        %1561 = vmatpush1.bf16.msra.mxu0 0
        %1562 = vmatprep.subr.bf16.mxu0 0
        %1563 = vmatpush1.bf16.msra.mxu0 0
        %1564 = vmatprep.subr.bf16.mxu0 0
        %1565 = vmatpush1.bf16.msra.mxu0 0
        %1566 = vmatprep.subr.bf16.mxu0 0
        %1567 = vmatpush1.bf16.msra.mxu0 0
        %1568 = vmatprep.subr.bf16.mxu0 0
        %1569 = vmatpush1.bf16.msra.mxu0 0
        %1570 = vmatprep.subr.bf16.mxu0 0
        %1571 = vmatpush1.bf16.msra.mxu0 0
        %1572 = vmatprep.subr.bf16.mxu0 0
        %1573 = vmatpush1.bf16.msra.mxu0 0
        %1574 = vmatprep.subr.bf16.mxu0 0
        %1575 = vmatpush1.bf16.msra.mxu0 0
        %1576 = vmatprep.subr.bf16.mxu0 0
        %1577 = vmatpush1.bf16.msra.mxu0 0
        %1578 = vmatprep.subr.bf16.mxu0 0
        %1579 = vmatpush1.bf16.msra.mxu0 0
        %1580 = vmatprep.subr.bf16.mxu0 0
        %1581 = vmatpush1.bf16.msra.mxu0 0
        %1582 = vmatprep.mubr.bf16.mxu0 0
        %1583 = vmatmul.mubr.bf16.gmra.mrb[0].mxu0 %v1548
        %v1584 = vpop.f32.mrb[0].mxu0
        %v1585 = vadd.f32 %v1521, %v1584
        %v1586 = vpop.f32.mrb[0].mxu0
        %v1587 = vpop.f32.mrb[0].mxu0
        %v1588 = vadd.f32 %v1521, %v1587
        %v1589 = vpop.f32.mrb[0].mxu0
        %1590 = vdwg.mxu0
        %v1591 = vadd.f32 %v1585, %v922
        %v1592 = vadd.f32 %v1588, %v923
        %v1593 = vld [vmem:[%s740] sm:$0x1]
        %v1594 = vld [vmem:[%s748] sm:$0x1]
        %v1595 = vsel %vm926, %v1591, 0.0
        %1596 = vadd.xlane.f32.xlu0 %v1595
        %v1597 = vpop.xlane.xlu0 %1596
        %v1598 = vsel %vm926, %v1592, 0.0
        %1599 = vadd.xlane.f32.xlu0 %v1598
        %v1600 = vpop.xlane.xlu0 %1599
        %v1601 = vmul.f32 %v1597, %v933
        %v1602 = vmul.f32 %v1600, %v933
        %v1603 = vsub.f32 %v1591, %v1601
        %v1604 = vsub.f32 %v1592, %v1602
        %v1605 = vmul.f32 %v1603, %v1603
        %v1606 = vmul.f32 %v1604, %v1604
        %v1607 = vsel %vm926, %v1605, 0.0
        %1608 = vadd.xlane.f32.xlu0 %v1607
        %v1609 = vpop.xlane.xlu0 %1608
        %v1610 = vsel %vm926, %v1606, 0.0
        %1611 = vadd.xlane.f32.xlu0 %v1610
        %v1612 = vpop.xlane.xlu0 %1611
        %v1613 = vmul.f32 %v1609, %v933
        %v1614 = vmul.f32 %v1612, %v933
        %v1615 = vadd.f32 %v1613, 1e-05
        %v1616 = vadd.f32 %v1614, 1e-05
        %v1617 = vrsqrt.pop %v1615
        %v1618 = vrsqrt.pop %v1616
        %v1619 = vmul.f32 %v1603, %v1617
        %v1620 = vmul.f32 %v1604, %v1618
        %v1622 = vlaneseq
        %v1623 = vshrl.u32 %v1622, 7
        %v1624 = vsub.s32 0, %v1623
        %v1625 = vrot.slane %v1593, %v1624
        %v1627 = vmul.f32 %v1619, %v1625
        %v1628 = vmul.f32 %v1620, %v1625
        %v1630 = vlaneseq
        %v1631 = vshrl.u32 %v1630, 7
        %v1632 = vsub.s32 0, %v1631
        %v1633 = vrot.slane %v1594, %v1632
        %v1635 = vadd.f32 %v1627, %v1633
        %v1636 = vadd.f32 %v1628, %v1633
        %v1637 = vpack.c.bf16 %v1636, %v1635
        %v1638 = vld [vmem:[%s757] sm:$0xf]
        %v1639 = vld [vmem:[%s757 + $0x4] sm:$0xf]
        %v1640 = vld [vmem:[%s757 + $0x8] sm:$0xf]
        %v1641 = vld [vmem:[%s757 + $0xc] sm:$0xf]
        %v1642 = vld [vmem:[%s757 + $0x10] sm:$0xf]
        %v1643 = vld [vmem:[%s757 + $0x14] sm:$0xf]
        %v1644 = vld [vmem:[%s757 + $0x18] sm:$0xf]
        %v1645 = vld [vmem:[%s757 + $0x1c] sm:$0xf]
        %v1646 = vld [vmem:[%s765] sm:$0x1]
        %v1648 = vlaneseq
        %v1649 = vshrl.u32 %v1648, 7
        %v1650 = vsub.s32 0, %v1649
        %v1651 = vrot.slane %v1646, %v1650
        %v1661 = vunpack.c.l.b16 %v1638
        %v1662 = vunpack.c.l.b16 %v1639
        %v1663 = vunpack.c.l.b16 %v1640
        %v1664 = vunpack.c.l.b16 %v1641
        %v1665 = vunpack.c.l.b16 %v1642
        %v1666 = vunpack.c.l.b16 %v1643
        %v1667 = vunpack.c.l.b16 %v1644
        %v1668 = vunpack.c.l.b16 %v1645
        %v1669 = vpack.c.b16 %v1662, %v1661
        %v1670 = vpack.c.b16 %v1664, %v1663
        %v1671 = vpack.c.b16 %v1666, %v1665
        %v1672 = vpack.c.b16 %v1668, %v1667
        %v1678 = vsel %vm926, %v1637, 0
        %1680 = vmatprep.subr.bf16.mxu0 0
        %1681 = vmatpush1.bf16.msra.mxu0 %v1669
        %1682 = vmatprep.subr.bf16.mxu0 0
        %1683 = vmatpush1.bf16.msra.mxu0 %v1670
        %1684 = vmatprep.subr.bf16.mxu0 0
        %1685 = vmatpush1.bf16.msra.mxu0 %v1671
        %1686 = vmatprep.subr.bf16.mxu0 0
        %1687 = vmatpush1.bf16.msra.mxu0 %v1672
        %1688 = vmatprep.subr.bf16.mxu0 0
        %1689 = vmatpush1.bf16.msra.mxu0 0
        %1690 = vmatprep.subr.bf16.mxu0 0
        %1691 = vmatpush1.bf16.msra.mxu0 0
        %1692 = vmatprep.subr.bf16.mxu0 0
        %1693 = vmatpush1.bf16.msra.mxu0 0
        %1694 = vmatprep.subr.bf16.mxu0 0
        %1695 = vmatpush1.bf16.msra.mxu0 0
        %1696 = vmatprep.subr.bf16.mxu0 0
        %1697 = vmatpush1.bf16.msra.mxu0 0
        %1698 = vmatprep.subr.bf16.mxu0 0
        %1699 = vmatpush1.bf16.msra.mxu0 0
        %1700 = vmatprep.subr.bf16.mxu0 0
        %1701 = vmatpush1.bf16.msra.mxu0 0
        %1702 = vmatprep.subr.bf16.mxu0 0
        %1703 = vmatpush1.bf16.msra.mxu0 0
        %1704 = vmatprep.subr.bf16.mxu0 0
        %1705 = vmatpush1.bf16.msra.mxu0 0
        %1706 = vmatprep.subr.bf16.mxu0 0
        %1707 = vmatpush1.bf16.msra.mxu0 0
        %1708 = vmatprep.subr.bf16.mxu0 0
        %1709 = vmatpush1.bf16.msra.mxu0 0
        %1710 = vmatprep.subr.bf16.mxu0 0
        %1711 = vmatpush1.bf16.msra.mxu0 0
        %1712 = vmatprep.mubr.bf16.mxu0 0
        %1713 = vmatmul.mubr.bf16.gmra.mrb[0].mxu0 %v1678
        %v1714 = vpop.f32.mrb[0].mxu0
        %v1715 = vadd.f32 %v1651, %v1714
        %v1716 = vpop.f32.mrb[0].mxu0
        %v1717 = vpop.f32.mrb[0].mxu0
        %v1718 = vadd.f32 %v1651, %v1717
        %v1719 = vpop.f32.mrb[0].mxu0
        %1720 = vdwg.mxu0
        %v1721 = vmul.f32 %v1715, 0.5
        %v1722 = vmul.f32 %v1718, 0.5
        %v1723 = vmul.f32 %v1715, 0.044715
        %v1724 = vmul.f32 %v1718, 0.044715
        %v1725 = vmul.f32 %v1723, %v1715
        %v1726 = vmul.f32 %v1724, %v1718
        %v1727 = vmul.f32 %v1725, %v1715
        %v1728 = vmul.f32 %v1726, %v1718
        %v1729 = vadd.f32 %v1715, %v1727
        %v1730 = vadd.f32 %v1718, %v1728
        %v1731 = vmul.f32 %v1729, 0.7978846
        %v1732 = vmul.f32 %v1730, 0.7978846
        %v1733 = vtanh.pop %v1731
        %v1734 = vtanh.pop %v1732
        %v1735 = vadd.f32 %v1733, 1.0
        %v1736 = vadd.f32 %v1734, 1.0
        %v1737 = vmul.f32 %v1721, %v1735
        %v1738 = vmul.f32 %v1722, %v1736
        %v1739 = vpack.c.bf16 %v1738, %v1737
        %v1740 = vld [vmem:[%s907] sm:$0xf]
        %v1741 = vld [vmem:[%s907 + $0x4] sm:$0xf]
        %v1742 = vld [vmem:[%s907 + $0x8] sm:$0xf]
        %v1743 = vld [vmem:[%s907 + $0xc] sm:$0xf]
        %v1744 = vld [vmem:[%s907 + $0x10] sm:$0xf]
        %v1745 = vld [vmem:[%s907 + $0x14] sm:$0xf]
        %v1746 = vld [vmem:[%s907 + $0x18] sm:$0xf]
        %v1747 = vld [vmem:[%s907 + $0x1c] sm:$0xf]
        %v1748 = vld [vmem:[%s907 + $0x20] sm:$0xf]
        %v1749 = vld [vmem:[%s907 + $0x24] sm:$0xf]
        %v1750 = vld [vmem:[%s907 + $0x28] sm:$0xf]
        %v1751 = vld [vmem:[%s907 + $0x2c] sm:$0xf]
        %v1752 = vld [vmem:[%s907 + $0x30] sm:$0xf]
        %v1753 = vld [vmem:[%s907 + $0x34] sm:$0xf]
        %v1754 = vld [vmem:[%s907 + $0x38] sm:$0xf]
        %v1755 = vld [vmem:[%s907 + $0x3c] sm:$0xf]
        %v1756 = vld [vmem:[%s773] sm:$0x1]
        %v1758 = vlaneseq
        %v1759 = vshrl.u32 %v1758, 7
        %v1760 = vsub.s32 0, %v1759
        %v1761 = vrot.slane %v1756, %v1760
        %v1779 = vunpack.c.l.b16 %v1740
        %v1780 = vunpack.c.l.b16 %v1741
        %v1781 = vunpack.c.l.b16 %v1742
        %v1782 = vunpack.c.l.b16 %v1743
        %v1783 = vunpack.c.l.b16 %v1744
        %v1784 = vunpack.c.l.b16 %v1745
        %v1785 = vunpack.c.l.b16 %v1746
        %v1786 = vunpack.c.l.b16 %v1747
        %v1787 = vunpack.c.l.b16 %v1748
        %v1788 = vunpack.c.l.b16 %v1749
        %v1789 = vunpack.c.l.b16 %v1750
        %v1790 = vunpack.c.l.b16 %v1751
        %v1791 = vunpack.c.l.b16 %v1752
        %v1792 = vunpack.c.l.b16 %v1753
        %v1793 = vunpack.c.l.b16 %v1754
        %v1794 = vunpack.c.l.b16 %v1755
        %v1795 = vpack.c.b16 %v1780, %v1779
        %v1796 = vpack.c.b16 %v1782, %v1781
        %v1797 = vpack.c.b16 %v1784, %v1783
        %v1798 = vpack.c.b16 %v1786, %v1785
        %v1799 = vpack.c.b16 %v1788, %v1787
        %v1800 = vpack.c.b16 %v1790, %v1789
        %v1801 = vpack.c.b16 %v1792, %v1791
        %v1802 = vpack.c.b16 %v1794, %v1793
        %1811 = vmatprep.subr.bf16.mxu0 0
        %1812 = vmatpush1.bf16.msra.mxu0 %v1795
        %1813 = vmatprep.subr.bf16.mxu0 0
        %1814 = vmatpush1.bf16.msra.mxu0 %v1796
        %1815 = vmatprep.subr.bf16.mxu0 0
        %1816 = vmatpush1.bf16.msra.mxu0 %v1797
        %1817 = vmatprep.subr.bf16.mxu0 0
        %1818 = vmatpush1.bf16.msra.mxu0 %v1798
        %1819 = vmatprep.subr.bf16.mxu0 0
        %1820 = vmatpush1.bf16.msra.mxu0 %v1799
        %1821 = vmatprep.subr.bf16.mxu0 0
        %1822 = vmatpush1.bf16.msra.mxu0 %v1800
        %1823 = vmatprep.subr.bf16.mxu0 0
        %1824 = vmatpush1.bf16.msra.mxu0 %v1801
        %1825 = vmatprep.subr.bf16.mxu0 0
        %1826 = vmatpush1.bf16.msra.mxu0 %v1802
        %1827 = vmatprep.subr.bf16.mxu0 0
        %1828 = vmatpush1.bf16.msra.mxu0 0
        %1829 = vmatprep.subr.bf16.mxu0 0
        %1830 = vmatpush1.bf16.msra.mxu0 0
        %1831 = vmatprep.subr.bf16.mxu0 0
        %1832 = vmatpush1.bf16.msra.mxu0 0
        %1833 = vmatprep.subr.bf16.mxu0 0
        %1834 = vmatpush1.bf16.msra.mxu0 0
        %1835 = vmatprep.subr.bf16.mxu0 0
        %1836 = vmatpush1.bf16.msra.mxu0 0
        %1837 = vmatprep.subr.bf16.mxu0 0
        %1838 = vmatpush1.bf16.msra.mxu0 0
        %1839 = vmatprep.subr.bf16.mxu0 0
        %1840 = vmatpush1.bf16.msra.mxu0 0
        %1841 = vmatprep.subr.bf16.mxu0 0
        %1842 = vmatpush1.bf16.msra.mxu0 0
        %1843 = vmatprep.mubr.bf16.mxu0 0
        %1844 = vmatmul.mubr.bf16.gmra.mrb[0].mxu0 %v1739
        %v1845 = vpop.f32.mrb[0].mxu0
        %v1846 = vadd.f32 %v1761, %v1845
        %v1847 = vpop.f32.mrb[0].mxu0
        %v1848 = vpop.f32.mrb[0].mxu0
        %v1849 = vadd.f32 %v1761, %v1848
        %v1850 = vpop.f32.mrb[0].mxu0
        %1851 = vdwg.mxu0
        %v1852 = vadd.f32 %v1846, %v1591
        %v1853 = vadd.f32 %v1849, %v1592
        %1854 = vst.msk [vmem:[#allocation2] sm:$0xff] %vm926, %v1852
        %1855 = vst.msk [vmem:[#allocation2 + $0x8] sm:$0xff] %vm926, %v1853
        %p1856 = scmp.eq.s32.totalorder %s48, 1
        // Predicated region
        $region121: #{transformer_encoder_pallas.1} parent=87 // pred_check
          %p1857 = pneg %p1856
        $region122: #{transformer_encoder_pallas.1} parent=87 // pred_check_branch
          %1859 = sbr.rel (%p1857) target = $region124
        $region123: #{transformer_encoder_pallas.1} parent=87 // pred_region
          %1860 = vst.msk [vmem:[%s878] sm:$0xff] %vm926, %v1852
          %1861 = vst.msk [vmem:[%s878 + $0x8] sm:$0xff] %vm926, %v1853
        $region124: #{transformer_encoder_pallas.1} parent=87 // pred_fallthru
          _
        %s1862 = sand.u32 %s490, 1
        %s1863 = scalar_lea.sflag [#allocation5], %s1862
        %s1864 = sand.u32 %s490, 1
        %s1865 = smul.addr %s1864, 16
        %s1866 = scalar_lea.vmem [#allocation15], %s1865
        // Predicated region
        $region125: #{transformer_encoder_pallas.1} parent=87 // pred_check
          %p1867 = pneg %p500
        $region126: #{transformer_encoder_pallas.1} parent=87 // pred_check_branch
          %1869 = sbr.rel (%p1867) target = $region128
        $region127: #{transformer_encoder_pallas.1} parent=87 // pred_region
          %s1871 = ssub.s32 256, 256
          %1872 = vsyncadd %s1863, %s1871
          %s1873 = smul.addr %s47, 2
          %s1874 = smul.addr %s1873, 128
          %s1875 = scalar_lea.hbm %s17, %s1874
          %s1876 = sshll.u32 %s1866, 4
          %s1877 = int_to_ptr.vmem [resolvable:$true] %s1876
          %1882 = dma.vmem_to_hbm [thread:$0]  %s1877, 256, %s1875, %s1863, 128, 128, 8
        $region128: #{transformer_encoder_pallas.1} parent=87 // pred_fallthru
          _
      $region88: #{transformer_encoder_pallas.1} parent=5 // pred_fallthru
        _
      %p1883 = scmp.le.s32.totalorder 2, %s38
      // Predicated region
      $region129: #{transformer_encoder_pallas.1} parent=5 // pred_check
        %p1884 = pneg %p1883
      $region130: #{transformer_encoder_pallas.1} parent=5 // pred_check_branch
        %1886 = sbr.rel (%p1884) target = $region132
      $region131: #{transformer_encoder_pallas.1} parent=5 // pred_region
        %s1887 = ssub.s32 %s38, 2
        // Predicated region
        $region133: #{transformer_encoder_pallas.1} parent=131 // pred_check
          %p1888 = pneg %p506
        $region134: #{transformer_encoder_pallas.1} parent=131 // pred_check_branch
          %1890 = sbr.rel (%p1888) target = $region136
        $region135: #{transformer_encoder_pallas.1} parent=131 // pred_region
          %s1891 = sand.u32 %s491, 1
          %s1892 = scalar_lea.sflag [#allocation5], %s1891
          %s1893 = sand.u32 %s491, 1
          %s1894 = smul.addr %s1893, 16
          %s1895 = scalar_lea.vmem [#allocation15], %s1894
          %1896 = dma.done %s1892, 256
        $region136: #{transformer_encoder_pallas.1} parent=131 // pred_fallthru
          _
      $region132: #{transformer_encoder_pallas.1} parent=5 // pred_fallthru
        _
    $region6: #{transformer_encoder_pallas.1} parent=1 // loop_footer
      %s42 = sadd.s32 1, %s38
    $region7: #{transformer_encoder_pallas.1} parent=1 // loop_footer_branch
      %37 = sbr.rel target = $region3
    $region8: #{transformer_encoder_pallas.1} parent=1 // loop_exit
      _
    %1897 = vsyncpa [#allocation4], 1
    %s1898 = scalar_lea.sflag [#allocation4], 1
    %1899 = vsyncpa %s1898, 1
    %1900 = vsyncpa [#allocation7], 1
    %s1901 = scalar_lea.sflag [#allocation7], 1
    %1902 = vsyncpa %s1901, 1
    %1903 = vsyncpa [#allocation10], 1
    %s1904 = scalar_lea.sflag [#allocation10], 1
    %1905 = vsyncpa %s1904, 1
    %1906 = vsyncpa [#allocation13], 1
    %s1907 = scalar_lea.sflag [#allocation13], 1
    %1908 = vsyncpa %s1907, 1
    %1909 = vsyncpa [#allocation5], 1
    %s1910 = scalar_lea.sflag [#allocation5], 1
    %1911 = vsyncpa %s1910, 1

</llo_original>
